<compile_context>
chip_gen: v5e
topology: v5e:2x2
jax: 0.10.0
libtpu: 0.0.40
codegen_flags: <defaults>
</compile_context>

<pallas_src>
from functools import partial

import jax
import jax.numpy as jnp
from jax.experimental import pallas as pl
from jax.experimental.pallas import tpu as pltpu

NEG_SLOPE = 0.01      # nn.LeakyReLU default negative_slope
MIN_TILE = 512        # lanes; tile granularity
MAX_TILE = 16384      # lanes; keeps (20,TILE) f32 intermediates ~1.3 MiB (VMEM-friendly)


def _round_up(v, m):
    return ((v + m - 1) // m) * m


def _choose_tile(n):
    """Largest-possible batch tile that still leaves >=4 grid steps at large N.

    >=2 steps keep both v7x TensorCores busy via the 'parallel' grid axis; the cap
    keeps per-step VMEM footprint small on v7x's 64 MiB VMEM as well.
    """
    t = _round_up(max(pl.cdiv(max(n, 1), 4), MIN_TILE), MIN_TILE)
    return min(MAX_TILE, t)


def _net_kernel(slab_ref, x_ref, out_ref):
    """One batch tile, feature-major.

    slab_ref : (20, 128) f32 VMEM  packed weights (see pack_params)
    x_ref    : (2, T)    f32 VMEM  x.T tile (batch in lanes)
    out_ref  : (1, T)    f32 VMEM  y.T tile
    """
    x = x_ref[...]                                   # (2, T)

    w2a  = slab_ref[:, 0:20]                         # (20, 20) Res(2,20) second Linear weight
    w1a  = slab_ref[:, 20:22]                        # (20, 2)  Res(2,20) first  Linear weight
    b1a  = slab_ref[:, 22:23]                        # (20, 1)
    b2a  = slab_ref[:, 23:24]                        # (20, 1)
    w1bc = slab_ref[:, 24:25]                        # (20, 1)  Res(20,1) Linear(20,1) weight column
    w1b0 = slab_ref[0:1, 24:25]                      # (1, 1)   w1b[0]
    w1b1 = slab_ref[1:2, 24:25]                      # (1, 1)   w1b[1]
    b1b  = slab_ref[0:1, 25:26]                      # (1, 1)
    w2b  = slab_ref[0:1, 26:27]                      # (1, 1)
    b2b  = slab_ref[0:1, 27:28]                      # (1, 1)

    hi = jax.lax.Precision.HIGHEST

    # ---- Res(2, 20) ----
    t = jnp.tanh(jnp.dot(w1a, x, precision=hi,
                         preferred_element_type=jnp.float32) + b1a)          # (20, T)  MXU+EUP
    h = jnp.dot(w2a, t, precision=hi,
                preferred_element_type=jnp.float32) + b2a                    # (20, T)  MXU
    h = jnp.maximum(h, NEG_SLOPE * h)                                        # LeakyReLU (2 VALU ops)
    # skip  x @ eye(2, 20)  is NOT materialized; it's folded into the consumers below.

    # ---- Res(20, 1) ----
    # 20->1 contraction as a weighted sublane reduce (VPU/XLU); folded skip adds the
    # w1b[0]*x0 + w1b[1]*x1 contribution of the zero-padded skip rows.
    z = (jnp.sum(w1bc * h, axis=0, keepdims=True)
         + w1b0 * x[0:1, :] + w1b1 * x[1:2, :] + b1b)                        # (1, T)
    g = jnp.tanh(z)
    g = w2b * g + b2b                                                        # Linear(1,1) = scalar affine
    g = jnp.maximum(g, NEG_SLOPE * g)                                        # LeakyReLU
    # skip  h_full @ eye(20, 1)  ==  h_full row 0  ==  h[0] + x[0]  (folded here).
    out_ref[...] = (g + h[0:1, :] + x[0:1, :]).astype(out_ref.dtype)


def _pallas_net_t(slab, x_t, tile):
    """Feature-major core: x_t (2, N) -> (1, N). Ragged last block handled by Pallas."""
    n = x_t.shape[1]
    return pl.pallas_call(
        _net_kernel,
        out_shape=jax.ShapeDtypeStruct((1, n), jnp.float32),
        grid=(pl.cdiv(n, tile),),
        in_specs=[
            pl.BlockSpec((20, 128), lambda i: (0, 0)),   # weight slab, VMEM-resident
            pl.BlockSpec((2, tile), lambda i: (0, i)),   # x tile (batch in lanes)
        ],
        out_specs=pl.BlockSpec((1, tile), lambda i: (0, i)),   # lane-dense output tile
        compiler_params=pltpu.CompilerParams(
            dimension_semantics=("parallel",)),          # shard batch across TCs (v7x)
    )(slab, x_t)


@partial(jax.jit, static_argnums=(2,))
def _net_forward_t_jit(slab, x_t, tile):
    return _pallas_net_t(slab, x_t, tile)


@partial(jax.jit, static_argnums=(2,))
def _net_forward_jit(slab, x, tile):
    out_t = _pallas_net_t(slab, x.T, tile)   # boundary transpose kept for (N,2) API parity
    return out_t.T


def net_forward_t(x_t, slab):
    """Feature-major API: x_t (2, N) -> (1, N). No boundary transpose at all."""
    return _net_forward_t_jit(slab, x_t, _choose_tile(x_t.shape[1]))


def net_forward(x, slab):
    """x: (N, 2) float32 -> (N, 1) float32, same semantics as NET.forward."""
    return _net_forward_jit(slab, x, _choose_tile(x.shape[0]))


def make_params():
    """Deterministic PyTorch-layout parameters: Linear weight (out, in), bias (out,)."""
    keys = jax.random.split(jax.random.PRNGKey(42), 8)

    def lin(kw, kb, fan_in, fan_out):
        bound = 1.0 / jnp.sqrt(jnp.float32(fan_in))
        w = jax.random.uniform(kw, (fan_out, fan_in), jnp.float32, -bound, bound)
        b = jax.random.uniform(kb, (fan_out,), jnp.float32, -bound, bound)
        return w, b

    w1a, b1a = lin(keys[0], keys[1], 2, 20)     # Res(2,20)  Linear(2, 20)
    w2a, b2a = lin(keys[2], keys[3], 20, 20)    # Res(2,20)  Linear(20, 20)
    w1b, b1b = lin(keys[4], keys[5], 20, 1)     # Res(20,1)  Linear(20, 1)
    w2b, b2b = lin(keys[6], keys[7], 1, 1)      # Res(20,1)  Linear(1, 1)
    return (w1a, b1a, w2a, b2a, w1b, b1b, w2b, b2b)


def pack_params(params):
    """Pack everything (incl. the 3 scalars) into one (20,128) VMEM slab."""
    w1a, b1a, w2a, b2a, w1b, b1b, w2b, b2b = params
    slab = jnp.zeros((20, 128), jnp.float32)
    slab = slab.at[:, 0:20].set(w2a)        # 20x20 second-linear weight of Res(2,20)
    slab = slab.at[:, 20:22].set(w1a)       # Linear(2,20) weight, (out=20, in=2)
    slab = slab.at[:, 22].set(b1a)
    slab = slab.at[:, 23].set(b2a)
    slab = slab.at[:, 24].set(w1b[0, :])    # Linear(20,1) weight as a (20,) column
    slab = slab.at[0, 25].set(b1b[0])
    slab = slab.at[0, 26].set(w2b[0, 0])
    slab = slab.at[0, 27].set(b2b[0])
    return slab


def net_forward_ref(x, params):
    """Pure-JAX reference mirroring the PyTorch forward exactly (batch-major)."""
    w1a, b1a, w2a, b2a, w1b, b1b, w2b, b2b = params

    def leaky(v):
        return jnp.where(v >= 0, v, NEG_SLOPE * v)

    e1 = jnp.eye(2, 20, dtype=jnp.float32)
    e2 = jnp.eye(20, 1, dtype=jnp.float32)
    with jax.default_matmul_precision("highest"):
        h = leaky(jnp.tanh(x @ w1a.T + b1a) @ w2a.T + b2a) + x @ e1
        g = leaky(jnp.tanh(h @ w1b.T + b1b) @ w2b.T + b2b) + h @ e2
    return g


if __name__ == "__main__":
    params = make_params()
    slab = pack_params(params)

    # Small shape consistent with the module (batch=8, input_size=2), single grid step.
    x_small = jax.random.normal(jax.random.PRNGKey(0), (8, 2), dtype=jnp.float32)
    out = jax.block_until_ready(net_forward(x_small, slab))
    ref = net_forward_ref(x_small, params)
    assert out.shape == (8, 1), out.shape
    assert jnp.allclose(out, ref, atol=1e-5, rtol=1e-5), (out, ref)

    # Multi-step grid with a ragged (non-tile-multiple) last block.
    x_mid = jax.random.normal(jax.random.PRNGKey(1), (1337, 2), dtype=jnp.float32)
    out_m = jax.block_until_ready(net_forward(x_mid, slab))
    ref_m = net_forward_ref(x_mid, params)
    assert out_m.shape == (1337, 1), out_m.shape
    assert jnp.allclose(out_m, ref_m, atol=1e-5, rtol=1e-5)

    # Larger batch: exercises the adaptive (bigger) tile and >=4 parallel grid steps.
    x_big = jax.random.normal(jax.random.PRNGKey(2), (20000, 2), dtype=jnp.float32)
    out_b = jax.block_until_ready(net_forward(x_big, slab))
    ref_b = net_forward_ref(x_big, params)
    assert out_b.shape == (20000, 1), out_b.shape
    assert jnp.allclose(out_b, ref_b, atol=1e-5, rtol=1e-5)

    print("KERNEL_OK")
</pallas_src>

<mosaic_0001>
module attributes {stable_mosaic.version = 11 : i64} {
  func.func @_net_kernel(%arg0: i32, %arg1: memref<20x128xf32, #tpu.memory_space<vmem>>, %arg2: memref<2x512xf32, #tpu.memory_space<vmem>>, %arg3: memref<1x512xf32, #tpu.memory_space<vmem>>) attributes {dimension_semantics = [#tpu.dimension_semantics<parallel>], iteration_bounds = array<i64: 1>, scalar_prefetch = 0 : i64, scratch_operands = 0 : i64, tpu.core_type = #tpu.core_type<tc>, window_params = [{pipeline_mode = #tpu.pipeline_mode<synchronous>, transform_indices = @transform_0, window_bounds = array<i64: 20, 128>}, {transform_indices = @transform_1, window_bounds = array<i64: 2, 512>}, {transform_indices = @transform_2, window_bounds = array<i64: 1, 512>}]} {
    %c0 = arith.constant 0 : index
    %c0_0 = arith.constant 0 : index
    %0 = vector.load %arg2[%c0, %c0_0] : memref<2x512xf32, #tpu.memory_space<vmem>>, vector<2x512xf32>
    %c0_1 = arith.constant 0 : index
    %c0_2 = arith.constant 0 : index
    %1 = vector.load %arg1[%c0_1, %c0_2] : memref<20x128xf32, #tpu.memory_space<vmem>>, vector<20x20xf32>
    %c0_3 = arith.constant 0 : index
    %c20 = arith.constant 20 : index
    %2 = vector.load %arg1[%c0_3, %c20] : memref<20x128xf32, #tpu.memory_space<vmem>>, vector<20x2xf32>
    %c0_4 = arith.constant 0 : index
    %c22 = arith.constant 22 : index
    %3 = vector.load %arg1[%c0_4, %c22] : memref<20x128xf32, #tpu.memory_space<vmem>>, vector<20x1xf32>
    %c0_5 = arith.constant 0 : index
    %c23 = arith.constant 23 : index
    %4 = vector.load %arg1[%c0_5, %c23] : memref<20x128xf32, #tpu.memory_space<vmem>>, vector<20x1xf32>
    %c0_6 = arith.constant 0 : index
    %c24 = arith.constant 24 : index
    %5 = vector.load %arg1[%c0_6, %c24] : memref<20x128xf32, #tpu.memory_space<vmem>>, vector<20x1xf32>
    %c0_7 = arith.constant 0 : index
    %c24_8 = arith.constant 24 : index
    %6 = vector.load %arg1[%c0_7, %c24_8] : memref<20x128xf32, #tpu.memory_space<vmem>>, vector<1x1xf32>
    %c1 = arith.constant 1 : index
    %c24_9 = arith.constant 24 : index
    %7 = vector.load %arg1[%c1, %c24_9] : memref<20x128xf32, #tpu.memory_space<vmem>>, vector<1x1xf32>
    %c0_10 = arith.constant 0 : index
    %c25 = arith.constant 25 : index
    %8 = vector.load %arg1[%c0_10, %c25] : memref<20x128xf32, #tpu.memory_space<vmem>>, vector<1x1xf32>
    %c0_11 = arith.constant 0 : index
    %c26 = arith.constant 26 : index
    %9 = vector.load %arg1[%c0_11, %c26] : memref<20x128xf32, #tpu.memory_space<vmem>>, vector<1x1xf32>
    %c0_12 = arith.constant 0 : index
    %c27 = arith.constant 27 : index
    %10 = vector.load %arg1[%c0_12, %c27] : memref<20x128xf32, #tpu.memory_space<vmem>>, vector<1x1xf32>
    %cst = arith.constant dense<0.000000e+00> : vector<20x512xf32>
    %11 = tpu.matmul %2, %0, %cst {dimension_numbers = #tpu.dot_dimension_numbers<[1], [0], [0], [1], [0, 0, 1, 1], [], []>, precision = #tpu.contract_precision<fp32>} : vector<20x2xf32>, vector<2x512xf32>, vector<20x512xf32> -> vector<20x512xf32>
    %12 = vector.broadcast %3 : vector<20x1xf32> to vector<20x512xf32>
    %13 = arith.addf %11, %12 : vector<20x512xf32>
    %14 = math.tanh %13 : vector<20x512xf32>
    %cst_13 = arith.constant dense<0.000000e+00> : vector<20x512xf32>
    %15 = tpu.matmul %1, %14, %cst_13 {dimension_numbers = #tpu.dot_dimension_numbers<[1], [0], [0], [1], [0, 0, 1, 1], [], []>, precision = #tpu.contract_precision<fp32>} : vector<20x20xf32>, vector<20x512xf32>, vector<20x512xf32> -> vector<20x512xf32>
    %16 = vector.broadcast %4 : vector<20x1xf32> to vector<20x512xf32>
    %17 = arith.addf %15, %16 : vector<20x512xf32>
    %cst_14 = arith.constant 0.00999999977 : f32
    %18 = vector.broadcast %cst_14 : f32 to vector<20x512xf32>
    %19 = arith.mulf %18, %17 : vector<20x512xf32>
    %20 = arith.maximumf %17, %19 : vector<20x512xf32>
    %21 = vector.broadcast %5 : vector<20x1xf32> to vector<20x512xf32>
    %22 = arith.mulf %21, %20 : vector<20x512xf32>
    %cst_15 = arith.constant dense<0.000000e+00> : vector<512xf32>
    %23 = vector.multi_reduction <add>, %22, %cst_15 [0] : vector<20x512xf32> to vector<512xf32>
    %24 = vector.shape_cast %23 : vector<512xf32> to vector<1x512xf32>
    %25 = vector.extract_strided_slice %0 {offsets = [0, 0], sizes = [1, 512], strides = [1, 1]} : vector<2x512xf32> to vector<1x512xf32>
    %26 = vector.broadcast %6 : vector<1x1xf32> to vector<1x512xf32>
    %27 = arith.mulf %26, %25 : vector<1x512xf32>
    %28 = arith.addf %24, %27 : vector<1x512xf32>
    %29 = vector.extract_strided_slice %0 {offsets = [1, 0], sizes = [1, 512], strides = [1, 1]} : vector<2x512xf32> to vector<1x512xf32>
    %30 = vector.broadcast %7 : vector<1x1xf32> to vector<1x512xf32>
    %31 = arith.mulf %30, %29 : vector<1x512xf32>
    %32 = arith.addf %28, %31 : vector<1x512xf32>
    %33 = vector.broadcast %8 : vector<1x1xf32> to vector<1x512xf32>
    %34 = arith.addf %32, %33 : vector<1x512xf32>
    %35 = math.tanh %34 : vector<1x512xf32>
    %36 = vector.broadcast %9 : vector<1x1xf32> to vector<1x512xf32>
    %37 = arith.mulf %36, %35 : vector<1x512xf32>
    %38 = vector.broadcast %10 : vector<1x1xf32> to vector<1x512xf32>
    %39 = arith.addf %37, %38 : vector<1x512xf32>
    %cst_16 = arith.constant 0.00999999977 : f32
    %40 = vector.broadcast %cst_16 : f32 to vector<1x512xf32>
    %41 = arith.mulf %40, %39 : vector<1x512xf32>
    %42 = arith.maximumf %39, %41 : vector<1x512xf32>
    %43 = vector.extract_strided_slice %20 {offsets = [0, 0], sizes = [1, 512], strides = [1, 1]} : vector<20x512xf32> to vector<1x512xf32>
    %44 = arith.addf %42, %43 : vector<1x512xf32>
    %45 = vector.extract_strided_slice %0 {offsets = [0, 0], sizes = [1, 512], strides = [1, 1]} : vector<2x512xf32> to vector<1x512xf32>
    %46 = arith.addf %44, %45 : vector<1x512xf32>
    %c0_17 = arith.constant 0 : index
    %c0_18 = arith.constant 0 : index
    %47 = vector.load %arg3[%c0_17, %c0_18] : memref<1x512xf32, #tpu.memory_space<vmem>>, vector<1x512xf32>
    tpu.vector_store %arg3[%c0_17, %c0_18], %46 {strides = array<i32>} : memref<1x512xf32, #tpu.memory_space<vmem>>, vector<1x512xf32>,
    return
  }
  func.func @transform_0(%arg0: i32) -> (i32, i32) {
    %c0_i32 = arith.constant 0 : i32
    %c0_i32_0 = arith.constant 0 : i32
    %c0_i32_1 = arith.constant 0 : i32
    return %c0_i32, %c0_i32_0 : i32, i32
  }
  func.func @transform_1(%arg0: i32) -> (i32, i32) {
    %c0_i32 = arith.constant 0 : i32
    %c0_i32_0 = arith.constant 0 : i32
    return %c0_i32, %arg0 : i32, i32
  }
  func.func @transform_2(%arg0: i32) -> (i32, i32) {
    %c0_i32 = arith.constant 0 : i32
    %c0_i32_0 = arith.constant 0 : i32
    return %c0_i32, %arg0 : i32, i32
  }
}

</mosaic_0001>

<llo_original>
// kernel: _net_forward_jit.1
$region0: #{_net_forward_jit.1}
  #allocation0 [shape = 'u32[]', space=smem, size = 0x4, offset = 0x4, fixed_abs, tag = 'smem constant byte address 0x4 - core index']
  #allocation1 [shape = 'u32[72,128]{1,0:T(1,128)}', space=vmem, size = 0x9000, scoped, tag = 'internal scratch']
  %s0 = inlined_call_operand.hbm [shape: f32[20,128], index: 0, kind: input, shape index: {}]
  %s1 = inlined_call_operand.hbm [shape: f32[2,8], index: 1, kind: input, shape index: {}]
  %s2 = inlined_call_operand.hbm [shape: f32[1,8], index: 2, kind: output, shape index: {}]
  %s3 = sld [smem:[#allocation0]]
  $region26: #{_net_forward_jit.1} parent=0
    _
  %s5 = ssub.s32 1, %s3
  %s6 = scalar_select 0, %s5, %s3
  $region1: #{_net_forward_jit.1} parent=0
    #allocation2 [shape = 'u8[12288]{0}', space=vmem, size = 0x3000, scoped, tag = 'input window, operand 0, single buffered']
    #allocation3 [shape = 's32[1]{0}', space=sflag, size = 0x4, scoped, tag = 'scoped memory for _net_forward_jit.1']
    #allocation4 [shape = 's32[1]{0}', space=sflag, size = 0x4, scoped, tag = 'scoped memory for _net_forward_jit.1']
    #allocation5 [shape = 'u8[4096]{0}', space=vmem, size = 0x1000, scoped, tag = 'input window, operand 1, single buffered']
    #allocation6 [shape = 's32[1]{0}', space=sflag, size = 0x4, scoped, tag = 'scoped memory for _net_forward_jit.1']
    #allocation7 [shape = 'u8[2048]{0}', space=vmem, size = 0x800, scoped, tag = 'output window, operand 0, single buffered']
    %7 = vsyncpa [#allocation3], 0
    %8 = vsyncpa [#allocation6], 0
    %9 = vsyncpa [#allocation4], 0
    // Predicated region
    $region2: #{_net_forward_jit.1} parent=1 // pred_check
      _
    $region3: #{_net_forward_jit.1} parent=1 // pred_check_branch
      %11 = sbr.rel (0) target = $region5
    $region4: #{_net_forward_jit.1} parent=1 // pred_region
      %13 = vsyncadd [#allocation3], 0
      %s14 = sshll.u32 %s0, 4
      %s15 = int_to_ptr.hbm [resolvable:$true] %s14
      %s16 = sshll.u32 [#allocation2], 4
      %s17 = int_to_ptr.vmem [resolvable:$true] %s16
      %22 = dma.hbm_to_vmem [thread:$0]  %s15, 384, %s17, [#allocation3], 128, 128, 8
    $region5: #{_net_forward_jit.1} parent=1 // pred_fallthru
      _
    // Predicated region
    $region6: #{_net_forward_jit.1} parent=1 // pred_check
      _
    $region7: #{_net_forward_jit.1} parent=1 // pred_check_branch
      %24 = sbr.rel (0) target = $region9
    $region8: #{_net_forward_jit.1} parent=1 // pred_region
      %26 = vsyncadd [#allocation6], 96
      %s28 = sshll.u32 %s1, 4
      %s29 = int_to_ptr.hbm [resolvable:$true] %s28
      %s30 = sshll.u32 [#allocation5], 4
      %s31 = int_to_ptr.vmem [resolvable:$true] %s30
      %33 = dma.hbm_to_vmem [thread:$0]  %s29, 32, %s31, [#allocation6]
    $region9: #{_net_forward_jit.1} parent=1 // pred_fallthru
      _
    // Predicated region
    $region10: #{_net_forward_jit.1} parent=1 // pred_check
      _
    $region11: #{_net_forward_jit.1} parent=1 // pred_check_branch
      %35 = sbr.rel (0) target = $region13
    $region12: #{_net_forward_jit.1} parent=1 // pred_region
      %37 = dma.done [#allocation3], 384
    $region13: #{_net_forward_jit.1} parent=1 // pred_fallthru
      _
    // Predicated region
    $region14: #{_net_forward_jit.1} parent=1 // pred_check
      _
    $region15: #{_net_forward_jit.1} parent=1 // pred_check_branch
      %39 = sbr.rel (0) target = $region17
    $region16: #{_net_forward_jit.1} parent=1 // pred_region
      %41 = dma.done [#allocation6], 128
    $region17: #{_net_forward_jit.1} parent=1 // pred_fallthru
      _
    %v42 = vld [vmem:[#allocation5] sm:$0xff]
    %v43 = vld [vmem:[#allocation2] sm:$0xff]
    %v44 = vld [vmem:[#allocation2 + $0x8] sm:$0xff]
    %v45 = vld [vmem:[#allocation2 + $0x10] sm:$0xf]
    %v46 = vld [vmem:[#allocation2] sm:$0x1]
    %v47 = vld [vmem:[#allocation2 + $0x1] sm:$0x1]
    %49 = vset.pattern.permute.xlu0 22
    %50 = vperm.xlu0 %49, %v43
    %v51 = vpop.permute.xlu0 %50
    %54 = vset.pattern.permute.xlu0 22
    %55 = vperm.xlu0 %54, %v44
    %v56 = vpop.permute.xlu0 %55
    %59 = vset.pattern.permute.xlu0 22
    %60 = vperm.xlu0 %59, %v45
    %v61 = vpop.permute.xlu0 %60
    %63 = vrot.lane.b32.xlu0 %v43, 108
    %v64 = vpop.permute.xlu0 %63
    %65 = vrot.lane.b32.xlu0 %v44, 108
    %v66 = vpop.permute.xlu0 %65
    %67 = vrot.lane.b32.xlu0 %v45, 108
    %v68 = vpop.permute.xlu0 %67
    %70 = vst [vmem:[#allocation1] ss:$4 sm:$0xff] %v42
    %v71 = vld.sshfl [vmem:[#allocation1] sm:$0xff pattern:$0x73625140]
    %v72 = vld.sshfl [vmem:[#allocation1 + $0x8] sm:$0xff pattern:$0x73625140]
    %v73 = vld.sshfl [vmem:[#allocation1 + $0x10] sm:$0xff pattern:$0x73625140]
    %v74 = vld.sshfl [vmem:[#allocation1 + $0x18] sm:$0xff pattern:$0x73625140]
    %vm75 = vcmask 15360
    %v76 = vsel %vm75, %v64, 0
    %v78 = vsel %vm75, %v66, 0
    %v80 = vsel %vm75, %v68, 0
    %vm82 = vcmask 1041408
    %v83 = vsel %vm82, %v71, 0
    %v85 = vsel %vm82, %v72, 0
    %v87 = vsel %vm82, %v73, 0
    %v89 = vsel %vm82, %v74, 0
    %91 = vmatpush.msra.mxu0 0.0
    %92 = vmatpush.msra.mxu0 0.0
    %93 = vmatpush.msra.mxu0 0.0
    %94 = vmatpush.msra.mxu0 0.0
    %95 = vmatpush.msra.mxu0 0.0
    %96 = vmatpush.msra.mxu0 0.0
    %97 = vmatpush.msra.mxu0 0.0
    %98 = vmatpush.msra.mxu0 0.0
    %99 = vmatpush.msra.mxu0 0.0
    %100 = vmatpush.msra.mxu0 0.0
    %101 = vmatpush.msra.mxu0 0.0
    %102 = vmatpush.msra.mxu0 0.0
    %103 = vmatpush.msra.mxu0 0.0
    %104 = vmatpush.msra.mxu0 0.0
    %105 = vmatpush.msra.mxu0 0.0
    %v106 = vand.u32 %v83, 4294901760
    %107 = vmatpush.msra.mxu0 %v106
    %v108 = vand.u32 %v76, 4294901760
    %v109 = vsub.f32 %v76, %v108
    %v110 = vand.u32 %v109, 4294901760
    %v111 = vsub.f32 %v109, %v110
    %v112 = vand.u32 %v111, 4294901760
    %113 = vmatmul.f32.gmra.mxu0 %v112
    %v114 = vpop.f32.mrf.mxu0
    %v115 = vadd.f32 %v51, %v114
    %v116 = vand.u32 %v78, 4294901760
    %v117 = vsub.f32 %v78, %v116
    %v118 = vand.u32 %v117, 4294901760
    %v119 = vsub.f32 %v117, %v118
    %v120 = vand.u32 %v119, 4294901760
    %121 = vmatmul.f32.gmra.mxu0 %v120
    %v122 = vpop.f32.mrf.mxu0
    %v123 = vadd.f32 %v56, %v122
    %v124 = vand.u32 %v80, 4294901760
    %v125 = vsub.f32 %v80, %v124
    %v126 = vand.u32 %v125, 4294901760
    %v127 = vsub.f32 %v125, %v126
    %v128 = vand.u32 %v127, 4294901760
    %129 = vmatmul.f32.gmra.mxu0 %v128
    %v130 = vpop.f32.mrf.mxu0
    %v131 = vadd.f32 %v61, %v130
    %132 = vdwg.mxu0
    %133 = vmatpush.msra.mxu0 0.0
    %134 = vmatpush.msra.mxu0 0.0
    %135 = vmatpush.msra.mxu0 0.0
    %136 = vmatpush.msra.mxu0 0.0
    %137 = vmatpush.msra.mxu0 0.0
    %138 = vmatpush.msra.mxu0 0.0
    %139 = vmatpush.msra.mxu0 0.0
    %140 = vmatpush.msra.mxu0 0.0
    %141 = vmatpush.msra.mxu0 0.0
    %142 = vmatpush.msra.mxu0 0.0
    %143 = vmatpush.msra.mxu0 0.0
    %144 = vmatpush.msra.mxu0 0.0
    %145 = vmatpush.msra.mxu0 0.0
    %146 = vmatpush.msra.mxu0 0.0
    %147 = vmatpush.msra.mxu0 0.0
    %v148 = vand.u32 %v83, 4294901760
    %v149 = vsub.f32 %v83, %v148
    %v150 = vand.u32 %v149, 4294901760
    %v151 = vsub.f32 %v149, %v150
    %v152 = vand.u32 %v151, 4294901760
    %153 = vmatpush.msra.mxu0 %v152
    %v154 = vand.u32 %v76, 4294901760
    %155 = vmatmul.f32.gmra.mxu0 %v154
    %v156 = vpop.f32.mrf.mxu0
    %v157 = vadd.f32 %v115, %v156
    %v158 = vand.u32 %v78, 4294901760
    %159 = vmatmul.f32.gmra.mxu0 %v158
    %v160 = vpop.f32.mrf.mxu0
    %v161 = vadd.f32 %v123, %v160
    %v162 = vand.u32 %v80, 4294901760
    %163 = vmatmul.f32.gmra.mxu0 %v162
    %v164 = vpop.f32.mrf.mxu0
    %v165 = vadd.f32 %v131, %v164
    %166 = vdwg.mxu0
    %167 = vmatpush.msra.mxu0 0.0
    %168 = vmatpush.msra.mxu0 0.0
    %169 = vmatpush.msra.mxu0 0.0
    %170 = vmatpush.msra.mxu0 0.0
    %171 = vmatpush.msra.mxu0 0.0
    %172 = vmatpush.msra.mxu0 0.0
    %173 = vmatpush.msra.mxu0 0.0
    %174 = vmatpush.msra.mxu0 0.0
    %175 = vmatpush.msra.mxu0 0.0
    %176 = vmatpush.msra.mxu0 0.0
    %177 = vmatpush.msra.mxu0 0.0
    %178 = vmatpush.msra.mxu0 0.0
    %179 = vmatpush.msra.mxu0 0.0
    %180 = vmatpush.msra.mxu0 0.0
    %181 = vmatpush.msra.mxu0 0.0
    %v182 = vand.u32 %v83, 4294901760
    %v183 = vsub.f32 %v83, %v182
    %184 = vmatpush.msra.mxu0 %v183
    %v185 = vand.u32 %v76, 4294901760
    %v186 = vsub.f32 %v76, %v185
    %187 = vmatmul.f32.gmra.mxu0 %v186
    %v188 = vpop.f32.mrf.mxu0
    %v189 = vadd.f32 %v157, %v188
    %v190 = vand.u32 %v78, 4294901760
    %v191 = vsub.f32 %v78, %v190
    %192 = vmatmul.f32.gmra.mxu0 %v191
    %v193 = vpop.f32.mrf.mxu0
    %v194 = vadd.f32 %v161, %v193
    %v195 = vand.u32 %v80, 4294901760
    %v196 = vsub.f32 %v80, %v195
    %197 = vmatmul.f32.gmra.mxu0 %v196
    %v198 = vpop.f32.mrf.mxu0
    %v199 = vadd.f32 %v165, %v198
    %200 = vdwg.mxu0
    %201 = vmatpush.msra.mxu0 0.0
    %202 = vmatpush.msra.mxu0 0.0
    %203 = vmatpush.msra.mxu0 0.0
    %204 = vmatpush.msra.mxu0 0.0
    %205 = vmatpush.msra.mxu0 0.0
    %206 = vmatpush.msra.mxu0 0.0
    %207 = vmatpush.msra.mxu0 0.0
    %208 = vmatpush.msra.mxu0 0.0
    %209 = vmatpush.msra.mxu0 0.0
    %210 = vmatpush.msra.mxu0 0.0
    %211 = vmatpush.msra.mxu0 0.0
    %212 = vmatpush.msra.mxu0 0.0
    %213 = vmatpush.msra.mxu0 0.0
    %214 = vmatpush.msra.mxu0 0.0
    %215 = vmatpush.msra.mxu0 0.0
    %v216 = vand.u32 %v83, 4294901760
    %217 = vmatpush.msra.mxu0 %v216
    %v218 = vand.u32 %v76, 4294901760
    %v219 = vsub.f32 %v76, %v218
    %v220 = vand.u32 %v219, 4294901760
    %221 = vmatmul.f32.gmra.mxu0 %v220
    %v222 = vpop.f32.mrf.mxu0
    %v223 = vadd.f32 %v189, %v222
    %v224 = vand.u32 %v78, 4294901760
    %v225 = vsub.f32 %v78, %v224
    %v226 = vand.u32 %v225, 4294901760
    %227 = vmatmul.f32.gmra.mxu0 %v226
    %v228 = vpop.f32.mrf.mxu0
    %v229 = vadd.f32 %v194, %v228
    %v230 = vand.u32 %v80, 4294901760
    %v231 = vsub.f32 %v80, %v230
    %v232 = vand.u32 %v231, 4294901760
    %233 = vmatmul.f32.gmra.mxu0 %v232
    %v234 = vpop.f32.mrf.mxu0
    %v235 = vadd.f32 %v199, %v234
    %236 = vdwg.mxu0
    %237 = vmatpush.msra.mxu0 0.0
    %238 = vmatpush.msra.mxu0 0.0
    %239 = vmatpush.msra.mxu0 0.0
    %240 = vmatpush.msra.mxu0 0.0
    %241 = vmatpush.msra.mxu0 0.0
    %242 = vmatpush.msra.mxu0 0.0
    %243 = vmatpush.msra.mxu0 0.0
    %244 = vmatpush.msra.mxu0 0.0
    %245 = vmatpush.msra.mxu0 0.0
    %246 = vmatpush.msra.mxu0 0.0
    %247 = vmatpush.msra.mxu0 0.0
    %248 = vmatpush.msra.mxu0 0.0
    %249 = vmatpush.msra.mxu0 0.0
    %250 = vmatpush.msra.mxu0 0.0
    %251 = vmatpush.msra.mxu0 0.0
    %v252 = vand.u32 %v83, 4294901760
    %v253 = vsub.f32 %v83, %v252
    %v254 = vand.u32 %v253, 4294901760
    %255 = vmatpush.msra.mxu0 %v254
    %v256 = vand.u32 %v76, 4294901760
    %257 = vmatmul.f32.gmra.mxu0 %v256
    %v258 = vpop.f32.mrf.mxu0
    %v259 = vadd.f32 %v223, %v258
    %v260 = vand.u32 %v78, 4294901760
    %261 = vmatmul.f32.gmra.mxu0 %v260
    %v262 = vpop.f32.mrf.mxu0
    %v263 = vadd.f32 %v229, %v262
    %v264 = vand.u32 %v80, 4294901760
    %265 = vmatmul.f32.gmra.mxu0 %v264
    %v266 = vpop.f32.mrf.mxu0
    %v267 = vadd.f32 %v235, %v266
    %268 = vdwg.mxu0
    %269 = vmatpush.msra.mxu0 0.0
    %270 = vmatpush.msra.mxu0 0.0
    %271 = vmatpush.msra.mxu0 0.0
    %272 = vmatpush.msra.mxu0 0.0
    %273 = vmatpush.msra.mxu0 0.0
    %274 = vmatpush.msra.mxu0 0.0
    %275 = vmatpush.msra.mxu0 0.0
    %276 = vmatpush.msra.mxu0 0.0
    %277 = vmatpush.msra.mxu0 0.0
    %278 = vmatpush.msra.mxu0 0.0
    %279 = vmatpush.msra.mxu0 0.0
    %280 = vmatpush.msra.mxu0 0.0
    %281 = vmatpush.msra.mxu0 0.0
    %282 = vmatpush.msra.mxu0 0.0
    %283 = vmatpush.msra.mxu0 0.0
    %v284 = vand.u32 %v83, 4294901760
    %285 = vmatpush.msra.mxu0 %v284
    %v286 = vand.u32 %v76, 4294901760
    %287 = vmatmul.f32.gmra.mxu0 %v286
    %v288 = vpop.f32.mrf.mxu0
    %v289 = vadd.f32 %v259, %v288
    %v290 = vand.u32 %v78, 4294901760
    %291 = vmatmul.f32.gmra.mxu0 %v290
    %v292 = vpop.f32.mrf.mxu0
    %v293 = vadd.f32 %v263, %v292
    %v294 = vand.u32 %v80, 4294901760
    %295 = vmatmul.f32.gmra.mxu0 %v294
    %v296 = vpop.f32.mrf.mxu0
    %v297 = vadd.f32 %v267, %v296
    %298 = vdwg.mxu0
    %299 = vmatpush.msra.mxu0 0.0
    %300 = vmatpush.msra.mxu0 0.0
    %301 = vmatpush.msra.mxu0 0.0
    %302 = vmatpush.msra.mxu0 0.0
    %303 = vmatpush.msra.mxu0 0.0
    %304 = vmatpush.msra.mxu0 0.0
    %305 = vmatpush.msra.mxu0 0.0
    %306 = vmatpush.msra.mxu0 0.0
    %307 = vmatpush.msra.mxu0 0.0
    %308 = vmatpush.msra.mxu0 0.0
    %309 = vmatpush.msra.mxu0 0.0
    %310 = vmatpush.msra.mxu0 0.0
    %311 = vmatpush.msra.mxu0 0.0
    %312 = vmatpush.msra.mxu0 0.0
    %313 = vmatpush.msra.mxu0 0.0
    %v314 = vand.u32 %v85, 4294901760
    %315 = vmatpush.msra.mxu0 %v314
    %v316 = vand.u32 %v76, 4294901760
    %v317 = vsub.f32 %v76, %v316
    %v318 = vand.u32 %v317, 4294901760
    %v319 = vsub.f32 %v317, %v318
    %v320 = vand.u32 %v319, 4294901760
    %321 = vmatmul.f32.gmra.mxu0 %v320
    %v322 = vpop.f32.mrf.mxu0
    %v323 = vadd.f32 %v51, %v322
    %v324 = vand.u32 %v78, 4294901760
    %v325 = vsub.f32 %v78, %v324
    %v326 = vand.u32 %v325, 4294901760
    %v327 = vsub.f32 %v325, %v326
    %v328 = vand.u32 %v327, 4294901760
    %329 = vmatmul.f32.gmra.mxu0 %v328
    %v330 = vpop.f32.mrf.mxu0
    %v331 = vadd.f32 %v56, %v330
    %v332 = vand.u32 %v80, 4294901760
    %v333 = vsub.f32 %v80, %v332
    %v334 = vand.u32 %v333, 4294901760
    %v335 = vsub.f32 %v333, %v334
    %v336 = vand.u32 %v335, 4294901760
    %337 = vmatmul.f32.gmra.mxu0 %v336
    %v338 = vpop.f32.mrf.mxu0
    %v339 = vadd.f32 %v61, %v338
    %340 = vdwg.mxu0
    %341 = vmatpush.msra.mxu0 0.0
    %342 = vmatpush.msra.mxu0 0.0
    %343 = vmatpush.msra.mxu0 0.0
    %344 = vmatpush.msra.mxu0 0.0
    %345 = vmatpush.msra.mxu0 0.0
    %346 = vmatpush.msra.mxu0 0.0
    %347 = vmatpush.msra.mxu0 0.0
    %348 = vmatpush.msra.mxu0 0.0
    %349 = vmatpush.msra.mxu0 0.0
    %350 = vmatpush.msra.mxu0 0.0
    %351 = vmatpush.msra.mxu0 0.0
    %352 = vmatpush.msra.mxu0 0.0
    %353 = vmatpush.msra.mxu0 0.0
    %354 = vmatpush.msra.mxu0 0.0
    %355 = vmatpush.msra.mxu0 0.0
    %v356 = vand.u32 %v85, 4294901760
    %v357 = vsub.f32 %v85, %v356
    %v358 = vand.u32 %v357, 4294901760
    %v359 = vsub.f32 %v357, %v358
    %v360 = vand.u32 %v359, 4294901760
    %361 = vmatpush.msra.mxu0 %v360
    %v362 = vand.u32 %v76, 4294901760
    %363 = vmatmul.f32.gmra.mxu0 %v362
    %v364 = vpop.f32.mrf.mxu0
    %v365 = vadd.f32 %v323, %v364
    %v366 = vand.u32 %v78, 4294901760
    %367 = vmatmul.f32.gmra.mxu0 %v366
    %v368 = vpop.f32.mrf.mxu0
    %v369 = vadd.f32 %v331, %v368
    %v370 = vand.u32 %v80, 4294901760
    %371 = vmatmul.f32.gmra.mxu0 %v370
    %v372 = vpop.f32.mrf.mxu0
    %v373 = vadd.f32 %v339, %v372
    %374 = vdwg.mxu0
    %375 = vmatpush.msra.mxu0 0.0
    %376 = vmatpush.msra.mxu0 0.0
    %377 = vmatpush.msra.mxu0 0.0
    %378 = vmatpush.msra.mxu0 0.0
    %379 = vmatpush.msra.mxu0 0.0
    %380 = vmatpush.msra.mxu0 0.0
    %381 = vmatpush.msra.mxu0 0.0
    %382 = vmatpush.msra.mxu0 0.0
    %383 = vmatpush.msra.mxu0 0.0
    %384 = vmatpush.msra.mxu0 0.0
    %385 = vmatpush.msra.mxu0 0.0
    %386 = vmatpush.msra.mxu0 0.0
    %387 = vmatpush.msra.mxu0 0.0
    %388 = vmatpush.msra.mxu0 0.0
    %389 = vmatpush.msra.mxu0 0.0
    %v390 = vand.u32 %v85, 4294901760
    %v391 = vsub.f32 %v85, %v390
    %392 = vmatpush.msra.mxu0 %v391
    %v393 = vand.u32 %v76, 4294901760
    %v394 = vsub.f32 %v76, %v393
    %395 = vmatmul.f32.gmra.mxu0 %v394
    %v396 = vpop.f32.mrf.mxu0
    %v397 = vadd.f32 %v365, %v396
    %v398 = vand.u32 %v78, 4294901760
    %v399 = vsub.f32 %v78, %v398
    %400 = vmatmul.f32.gmra.mxu0 %v399
    %v401 = vpop.f32.mrf.mxu0
    %v402 = vadd.f32 %v369, %v401
    %v403 = vand.u32 %v80, 4294901760
    %v404 = vsub.f32 %v80, %v403
    %405 = vmatmul.f32.gmra.mxu0 %v404
    %v406 = vpop.f32.mrf.mxu0
    %v407 = vadd.f32 %v373, %v406
    %408 = vdwg.mxu0
    %409 = vmatpush.msra.mxu0 0.0
    %410 = vmatpush.msra.mxu0 0.0
    %411 = vmatpush.msra.mxu0 0.0
    %412 = vmatpush.msra.mxu0 0.0
    %413 = vmatpush.msra.mxu0 0.0
    %414 = vmatpush.msra.mxu0 0.0
    %415 = vmatpush.msra.mxu0 0.0
    %416 = vmatpush.msra.mxu0 0.0
    %417 = vmatpush.msra.mxu0 0.0
    %418 = vmatpush.msra.mxu0 0.0
    %419 = vmatpush.msra.mxu0 0.0
    %420 = vmatpush.msra.mxu0 0.0
    %421 = vmatpush.msra.mxu0 0.0
    %422 = vmatpush.msra.mxu0 0.0
    %423 = vmatpush.msra.mxu0 0.0
    %v424 = vand.u32 %v85, 4294901760
    %425 = vmatpush.msra.mxu0 %v424
    %v426 = vand.u32 %v76, 4294901760
    %v427 = vsub.f32 %v76, %v426
    %v428 = vand.u32 %v427, 4294901760
    %429 = vmatmul.f32.gmra.mxu0 %v428
    %v430 = vpop.f32.mrf.mxu0
    %v431 = vadd.f32 %v397, %v430
    %v432 = vand.u32 %v78, 4294901760
    %v433 = vsub.f32 %v78, %v432
    %v434 = vand.u32 %v433, 4294901760
    %435 = vmatmul.f32.gmra.mxu0 %v434
    %v436 = vpop.f32.mrf.mxu0
    %v437 = vadd.f32 %v402, %v436
    %v438 = vand.u32 %v80, 4294901760
    %v439 = vsub.f32 %v80, %v438
    %v440 = vand.u32 %v439, 4294901760
    %441 = vmatmul.f32.gmra.mxu0 %v440
    %v442 = vpop.f32.mrf.mxu0
    %v443 = vadd.f32 %v407, %v442
    %444 = vdwg.mxu0
    %445 = vmatpush.msra.mxu0 0.0
    %446 = vmatpush.msra.mxu0 0.0
    %447 = vmatpush.msra.mxu0 0.0
    %448 = vmatpush.msra.mxu0 0.0
    %449 = vmatpush.msra.mxu0 0.0
    %450 = vmatpush.msra.mxu0 0.0
    %451 = vmatpush.msra.mxu0 0.0
    %452 = vmatpush.msra.mxu0 0.0
    %453 = vmatpush.msra.mxu0 0.0
    %454 = vmatpush.msra.mxu0 0.0
    %455 = vmatpush.msra.mxu0 0.0
    %456 = vmatpush.msra.mxu0 0.0
    %457 = vmatpush.msra.mxu0 0.0
    %458 = vmatpush.msra.mxu0 0.0
    %459 = vmatpush.msra.mxu0 0.0
    %v460 = vand.u32 %v85, 4294901760
    %v461 = vsub.f32 %v85, %v460
    %v462 = vand.u32 %v461, 4294901760
    %463 = vmatpush.msra.mxu0 %v462
    %v464 = vand.u32 %v76, 4294901760
    %465 = vmatmul.f32.gmra.mxu0 %v464
    %v466 = vpop.f32.mrf.mxu0
    %v467 = vadd.f32 %v431, %v466
    %v468 = vand.u32 %v78, 4294901760
    %469 = vmatmul.f32.gmra.mxu0 %v468
    %v470 = vpop.f32.mrf.mxu0
    %v471 = vadd.f32 %v437, %v470
    %v472 = vand.u32 %v80, 4294901760
    %473 = vmatmul.f32.gmra.mxu0 %v472
    %v474 = vpop.f32.mrf.mxu0
    %v475 = vadd.f32 %v443, %v474
    %476 = vdwg.mxu0
    %477 = vmatpush.msra.mxu0 0.0
    %478 = vmatpush.msra.mxu0 0.0
    %479 = vmatpush.msra.mxu0 0.0
    %480 = vmatpush.msra.mxu0 0.0
    %481 = vmatpush.msra.mxu0 0.0
    %482 = vmatpush.msra.mxu0 0.0
    %483 = vmatpush.msra.mxu0 0.0
    %484 = vmatpush.msra.mxu0 0.0
    %485 = vmatpush.msra.mxu0 0.0
    %486 = vmatpush.msra.mxu0 0.0
    %487 = vmatpush.msra.mxu0 0.0
    %488 = vmatpush.msra.mxu0 0.0
    %489 = vmatpush.msra.mxu0 0.0
    %490 = vmatpush.msra.mxu0 0.0
    %491 = vmatpush.msra.mxu0 0.0
    %v492 = vand.u32 %v85, 4294901760
    %493 = vmatpush.msra.mxu0 %v492
    %v494 = vand.u32 %v76, 4294901760
    %495 = vmatmul.f32.gmra.mxu0 %v494
    %v496 = vpop.f32.mrf.mxu0
    %v497 = vadd.f32 %v467, %v496
    %v498 = vand.u32 %v78, 4294901760
    %499 = vmatmul.f32.gmra.mxu0 %v498
    %v500 = vpop.f32.mrf.mxu0
    %v501 = vadd.f32 %v471, %v500
    %v502 = vand.u32 %v80, 4294901760
    %503 = vmatmul.f32.gmra.mxu0 %v502
    %v504 = vpop.f32.mrf.mxu0
    %v505 = vadd.f32 %v475, %v504
    %506 = vdwg.mxu0
    %507 = vmatpush.msra.mxu0 0.0
    %508 = vmatpush.msra.mxu0 0.0
    %509 = vmatpush.msra.mxu0 0.0
    %510 = vmatpush.msra.mxu0 0.0
    %511 = vmatpush.msra.mxu0 0.0
    %512 = vmatpush.msra.mxu0 0.0
    %513 = vmatpush.msra.mxu0 0.0
    %514 = vmatpush.msra.mxu0 0.0
    %515 = vmatpush.msra.mxu0 0.0
    %516 = vmatpush.msra.mxu0 0.0
    %517 = vmatpush.msra.mxu0 0.0
    %518 = vmatpush.msra.mxu0 0.0
    %519 = vmatpush.msra.mxu0 0.0
    %520 = vmatpush.msra.mxu0 0.0
    %521 = vmatpush.msra.mxu0 0.0
    %v522 = vand.u32 %v87, 4294901760
    %523 = vmatpush.msra.mxu0 %v522
    %v524 = vand.u32 %v76, 4294901760
    %v525 = vsub.f32 %v76, %v524
    %v526 = vand.u32 %v525, 4294901760
    %v527 = vsub.f32 %v525, %v526
    %v528 = vand.u32 %v527, 4294901760
    %529 = vmatmul.f32.gmra.mxu0 %v528
    %v530 = vpop.f32.mrf.mxu0
    %v531 = vadd.f32 %v51, %v530
    %v532 = vand.u32 %v78, 4294901760
    %v533 = vsub.f32 %v78, %v532
    %v534 = vand.u32 %v533, 4294901760
    %v535 = vsub.f32 %v533, %v534
    %v536 = vand.u32 %v535, 4294901760
    %537 = vmatmul.f32.gmra.mxu0 %v536
    %v538 = vpop.f32.mrf.mxu0
    %v539 = vadd.f32 %v56, %v538
    %v540 = vand.u32 %v80, 4294901760
    %v541 = vsub.f32 %v80, %v540
    %v542 = vand.u32 %v541, 4294901760
    %v543 = vsub.f32 %v541, %v542
    %v544 = vand.u32 %v543, 4294901760
    %545 = vmatmul.f32.gmra.mxu0 %v544
    %v546 = vpop.f32.mrf.mxu0
    %v547 = vadd.f32 %v61, %v546
    %548 = vdwg.mxu0
    %549 = vmatpush.msra.mxu0 0.0
    %550 = vmatpush.msra.mxu0 0.0
    %551 = vmatpush.msra.mxu0 0.0
    %552 = vmatpush.msra.mxu0 0.0
    %553 = vmatpush.msra.mxu0 0.0
    %554 = vmatpush.msra.mxu0 0.0
    %555 = vmatpush.msra.mxu0 0.0
    %556 = vmatpush.msra.mxu0 0.0
    %557 = vmatpush.msra.mxu0 0.0
    %558 = vmatpush.msra.mxu0 0.0
    %559 = vmatpush.msra.mxu0 0.0
    %560 = vmatpush.msra.mxu0 0.0
    %561 = vmatpush.msra.mxu0 0.0
    %562 = vmatpush.msra.mxu0 0.0
    %563 = vmatpush.msra.mxu0 0.0
    %v564 = vand.u32 %v87, 4294901760
    %v565 = vsub.f32 %v87, %v564
    %v566 = vand.u32 %v565, 4294901760
    %v567 = vsub.f32 %v565, %v566
    %v568 = vand.u32 %v567, 4294901760
    %569 = vmatpush.msra.mxu0 %v568
    %v570 = vand.u32 %v76, 4294901760
    %571 = vmatmul.f32.gmra.mxu0 %v570
    %v572 = vpop.f32.mrf.mxu0
    %v573 = vadd.f32 %v531, %v572
    %v574 = vand.u32 %v78, 4294901760
    %575 = vmatmul.f32.gmra.mxu0 %v574
    %v576 = vpop.f32.mrf.mxu0
    %v577 = vadd.f32 %v539, %v576
    %v578 = vand.u32 %v80, 4294901760
    %579 = vmatmul.f32.gmra.mxu0 %v578
    %v580 = vpop.f32.mrf.mxu0
    %v581 = vadd.f32 %v547, %v580
    %582 = vdwg.mxu0
    %583 = vmatpush.msra.mxu0 0.0
    %584 = vmatpush.msra.mxu0 0.0
    %585 = vmatpush.msra.mxu0 0.0
    %586 = vmatpush.msra.mxu0 0.0
    %587 = vmatpush.msra.mxu0 0.0
    %588 = vmatpush.msra.mxu0 0.0
    %589 = vmatpush.msra.mxu0 0.0
    %590 = vmatpush.msra.mxu0 0.0
    %591 = vmatpush.msra.mxu0 0.0
    %592 = vmatpush.msra.mxu0 0.0
    %593 = vmatpush.msra.mxu0 0.0
    %594 = vmatpush.msra.mxu0 0.0
    %595 = vmatpush.msra.mxu0 0.0
    %596 = vmatpush.msra.mxu0 0.0
    %597 = vmatpush.msra.mxu0 0.0
    %v598 = vand.u32 %v87, 4294901760
    %v599 = vsub.f32 %v87, %v598
    %600 = vmatpush.msra.mxu0 %v599
    %v601 = vand.u32 %v76, 4294901760
    %v602 = vsub.f32 %v76, %v601
    %603 = vmatmul.f32.gmra.mxu0 %v602
    %v604 = vpop.f32.mrf.mxu0
    %v605 = vadd.f32 %v573, %v604
    %v606 = vand.u32 %v78, 4294901760
    %v607 = vsub.f32 %v78, %v606
    %608 = vmatmul.f32.gmra.mxu0 %v607
    %v609 = vpop.f32.mrf.mxu0
    %v610 = vadd.f32 %v577, %v609
    %v611 = vand.u32 %v80, 4294901760
    %v612 = vsub.f32 %v80, %v611
    %613 = vmatmul.f32.gmra.mxu0 %v612
    %v614 = vpop.f32.mrf.mxu0
    %v615 = vadd.f32 %v581, %v614
    %616 = vdwg.mxu0
    %617 = vmatpush.msra.mxu0 0.0
    %618 = vmatpush.msra.mxu0 0.0
    %619 = vmatpush.msra.mxu0 0.0
    %620 = vmatpush.msra.mxu0 0.0
    %621 = vmatpush.msra.mxu0 0.0
    %622 = vmatpush.msra.mxu0 0.0
    %623 = vmatpush.msra.mxu0 0.0
    %624 = vmatpush.msra.mxu0 0.0
    %625 = vmatpush.msra.mxu0 0.0
    %626 = vmatpush.msra.mxu0 0.0
    %627 = vmatpush.msra.mxu0 0.0
    %628 = vmatpush.msra.mxu0 0.0
    %629 = vmatpush.msra.mxu0 0.0
    %630 = vmatpush.msra.mxu0 0.0
    %631 = vmatpush.msra.mxu0 0.0
    %v632 = vand.u32 %v87, 4294901760
    %633 = vmatpush.msra.mxu0 %v632
    %v634 = vand.u32 %v76, 4294901760
    %v635 = vsub.f32 %v76, %v634
    %v636 = vand.u32 %v635, 4294901760
    %637 = vmatmul.f32.gmra.mxu0 %v636
    %v638 = vpop.f32.mrf.mxu0
    %v639 = vadd.f32 %v605, %v638
    %v640 = vand.u32 %v78, 4294901760
    %v641 = vsub.f32 %v78, %v640
    %v642 = vand.u32 %v641, 4294901760
    %643 = vmatmul.f32.gmra.mxu0 %v642
    %v644 = vpop.f32.mrf.mxu0
    %v645 = vadd.f32 %v610, %v644
    %v646 = vand.u32 %v80, 4294901760
    %v647 = vsub.f32 %v80, %v646
    %v648 = vand.u32 %v647, 4294901760
    %649 = vmatmul.f32.gmra.mxu0 %v648
    %v650 = vpop.f32.mrf.mxu0
    %v651 = vadd.f32 %v615, %v650
    %652 = vdwg.mxu0
    %653 = vmatpush.msra.mxu0 0.0
    %654 = vmatpush.msra.mxu0 0.0
    %655 = vmatpush.msra.mxu0 0.0
    %656 = vmatpush.msra.mxu0 0.0
    %657 = vmatpush.msra.mxu0 0.0
    %658 = vmatpush.msra.mxu0 0.0
    %659 = vmatpush.msra.mxu0 0.0
    %660 = vmatpush.msra.mxu0 0.0
    %661 = vmatpush.msra.mxu0 0.0
    %662 = vmatpush.msra.mxu0 0.0
    %663 = vmatpush.msra.mxu0 0.0
    %664 = vmatpush.msra.mxu0 0.0
    %665 = vmatpush.msra.mxu0 0.0
    %666 = vmatpush.msra.mxu0 0.0
    %667 = vmatpush.msra.mxu0 0.0
    %v668 = vand.u32 %v87, 4294901760
    %v669 = vsub.f32 %v87, %v668
    %v670 = vand.u32 %v669, 4294901760
    %671 = vmatpush.msra.mxu0 %v670
    %v672 = vand.u32 %v76, 4294901760
    %673 = vmatmul.f32.gmra.mxu0 %v672
    %v674 = vpop.f32.mrf.mxu0
    %v675 = vadd.f32 %v639, %v674
    %v676 = vand.u32 %v78, 4294901760
    %677 = vmatmul.f32.gmra.mxu0 %v676
    %v678 = vpop.f32.mrf.mxu0
    %v679 = vadd.f32 %v645, %v678
    %v680 = vand.u32 %v80, 4294901760
    %681 = vmatmul.f32.gmra.mxu0 %v680
    %v682 = vpop.f32.mrf.mxu0
    %v683 = vadd.f32 %v651, %v682
    %684 = vdwg.mxu0
    %685 = vmatpush.msra.mxu0 0.0
    %686 = vmatpush.msra.mxu0 0.0
    %687 = vmatpush.msra.mxu0 0.0
    %688 = vmatpush.msra.mxu0 0.0
    %689 = vmatpush.msra.mxu0 0.0
    %690 = vmatpush.msra.mxu0 0.0
    %691 = vmatpush.msra.mxu0 0.0
    %692 = vmatpush.msra.mxu0 0.0
    %693 = vmatpush.msra.mxu0 0.0
    %694 = vmatpush.msra.mxu0 0.0
    %695 = vmatpush.msra.mxu0 0.0
    %696 = vmatpush.msra.mxu0 0.0
    %697 = vmatpush.msra.mxu0 0.0
    %698 = vmatpush.msra.mxu0 0.0
    %699 = vmatpush.msra.mxu0 0.0
    %v700 = vand.u32 %v87, 4294901760
    %701 = vmatpush.msra.mxu0 %v700
    %v702 = vand.u32 %v76, 4294901760
    %703 = vmatmul.f32.gmra.mxu0 %v702
    %v704 = vpop.f32.mrf.mxu0
    %v705 = vadd.f32 %v675, %v704
    %v706 = vand.u32 %v78, 4294901760
    %707 = vmatmul.f32.gmra.mxu0 %v706
    %v708 = vpop.f32.mrf.mxu0
    %v709 = vadd.f32 %v679, %v708
    %v710 = vand.u32 %v80, 4294901760
    %711 = vmatmul.f32.gmra.mxu0 %v710
    %v712 = vpop.f32.mrf.mxu0
    %v713 = vadd.f32 %v683, %v712
    %714 = vdwg.mxu0
    %715 = vmatpush.msra.mxu0 0.0
    %716 = vmatpush.msra.mxu0 0.0
    %717 = vmatpush.msra.mxu0 0.0
    %718 = vmatpush.msra.mxu0 0.0
    %719 = vmatpush.msra.mxu0 0.0
    %720 = vmatpush.msra.mxu0 0.0
    %721 = vmatpush.msra.mxu0 0.0
    %722 = vmatpush.msra.mxu0 0.0
    %723 = vmatpush.msra.mxu0 0.0
    %724 = vmatpush.msra.mxu0 0.0
    %725 = vmatpush.msra.mxu0 0.0
    %726 = vmatpush.msra.mxu0 0.0
    %727 = vmatpush.msra.mxu0 0.0
    %728 = vmatpush.msra.mxu0 0.0
    %729 = vmatpush.msra.mxu0 0.0
    %v730 = vand.u32 %v89, 4294901760
    %731 = vmatpush.msra.mxu0 %v730
    %v732 = vand.u32 %v76, 4294901760
    %v733 = vsub.f32 %v76, %v732
    %v734 = vand.u32 %v733, 4294901760
    %v735 = vsub.f32 %v733, %v734
    %v736 = vand.u32 %v735, 4294901760
    %737 = vmatmul.f32.gmra.mxu0 %v736
    %v738 = vpop.f32.mrf.mxu0
    %v739 = vadd.f32 %v51, %v738
    %v740 = vand.u32 %v78, 4294901760
    %v741 = vsub.f32 %v78, %v740
    %v742 = vand.u32 %v741, 4294901760
    %v743 = vsub.f32 %v741, %v742
    %v744 = vand.u32 %v743, 4294901760
    %745 = vmatmul.f32.gmra.mxu0 %v744
    %v746 = vpop.f32.mrf.mxu0
    %v747 = vadd.f32 %v56, %v746
    %v748 = vand.u32 %v80, 4294901760
    %v749 = vsub.f32 %v80, %v748
    %v750 = vand.u32 %v749, 4294901760
    %v751 = vsub.f32 %v749, %v750
    %v752 = vand.u32 %v751, 4294901760
    %753 = vmatmul.f32.gmra.mxu0 %v752
    %v754 = vpop.f32.mrf.mxu0
    %v755 = vadd.f32 %v61, %v754
    %756 = vdwg.mxu0
    %757 = vmatpush.msra.mxu0 0.0
    %758 = vmatpush.msra.mxu0 0.0
    %759 = vmatpush.msra.mxu0 0.0
    %760 = vmatpush.msra.mxu0 0.0
    %761 = vmatpush.msra.mxu0 0.0
    %762 = vmatpush.msra.mxu0 0.0
    %763 = vmatpush.msra.mxu0 0.0
    %764 = vmatpush.msra.mxu0 0.0
    %765 = vmatpush.msra.mxu0 0.0
    %766 = vmatpush.msra.mxu0 0.0
    %767 = vmatpush.msra.mxu0 0.0
    %768 = vmatpush.msra.mxu0 0.0
    %769 = vmatpush.msra.mxu0 0.0
    %770 = vmatpush.msra.mxu0 0.0
    %771 = vmatpush.msra.mxu0 0.0
    %v772 = vand.u32 %v89, 4294901760
    %v773 = vsub.f32 %v89, %v772
    %v774 = vand.u32 %v773, 4294901760
    %v775 = vsub.f32 %v773, %v774
    %v776 = vand.u32 %v775, 4294901760
    %777 = vmatpush.msra.mxu0 %v776
    %v778 = vand.u32 %v76, 4294901760
    %779 = vmatmul.f32.gmra.mxu0 %v778
    %v780 = vpop.f32.mrf.mxu0
    %v781 = vadd.f32 %v739, %v780
    %v782 = vand.u32 %v78, 4294901760
    %783 = vmatmul.f32.gmra.mxu0 %v782
    %v784 = vpop.f32.mrf.mxu0
    %v785 = vadd.f32 %v747, %v784
    %v786 = vand.u32 %v80, 4294901760
    %787 = vmatmul.f32.gmra.mxu0 %v786
    %v788 = vpop.f32.mrf.mxu0
    %v789 = vadd.f32 %v755, %v788
    %790 = vdwg.mxu0
    %791 = vmatpush.msra.mxu0 0.0
    %792 = vmatpush.msra.mxu0 0.0
    %793 = vmatpush.msra.mxu0 0.0
    %794 = vmatpush.msra.mxu0 0.0
    %795 = vmatpush.msra.mxu0 0.0
    %796 = vmatpush.msra.mxu0 0.0
    %797 = vmatpush.msra.mxu0 0.0
    %798 = vmatpush.msra.mxu0 0.0
    %799 = vmatpush.msra.mxu0 0.0
    %800 = vmatpush.msra.mxu0 0.0
    %801 = vmatpush.msra.mxu0 0.0
    %802 = vmatpush.msra.mxu0 0.0
    %803 = vmatpush.msra.mxu0 0.0
    %804 = vmatpush.msra.mxu0 0.0
    %805 = vmatpush.msra.mxu0 0.0
    %v806 = vand.u32 %v89, 4294901760
    %v807 = vsub.f32 %v89, %v806
    %808 = vmatpush.msra.mxu0 %v807
    %v809 = vand.u32 %v76, 4294901760
    %v810 = vsub.f32 %v76, %v809
    %811 = vmatmul.f32.gmra.mxu0 %v810
    %v812 = vpop.f32.mrf.mxu0
    %v813 = vadd.f32 %v781, %v812
    %v814 = vand.u32 %v78, 4294901760
    %v815 = vsub.f32 %v78, %v814
    %816 = vmatmul.f32.gmra.mxu0 %v815
    %v817 = vpop.f32.mrf.mxu0
    %v818 = vadd.f32 %v785, %v817
    %v819 = vand.u32 %v80, 4294901760
    %v820 = vsub.f32 %v80, %v819
    %821 = vmatmul.f32.gmra.mxu0 %v820
    %v822 = vpop.f32.mrf.mxu0
    %v823 = vadd.f32 %v789, %v822
    %824 = vdwg.mxu0
    %825 = vmatpush.msra.mxu0 0.0
    %826 = vmatpush.msra.mxu0 0.0
    %827 = vmatpush.msra.mxu0 0.0
    %828 = vmatpush.msra.mxu0 0.0
    %829 = vmatpush.msra.mxu0 0.0
    %830 = vmatpush.msra.mxu0 0.0
    %831 = vmatpush.msra.mxu0 0.0
    %832 = vmatpush.msra.mxu0 0.0
    %833 = vmatpush.msra.mxu0 0.0
    %834 = vmatpush.msra.mxu0 0.0
    %835 = vmatpush.msra.mxu0 0.0
    %836 = vmatpush.msra.mxu0 0.0
    %837 = vmatpush.msra.mxu0 0.0
    %838 = vmatpush.msra.mxu0 0.0
    %839 = vmatpush.msra.mxu0 0.0
    %v840 = vand.u32 %v89, 4294901760
    %841 = vmatpush.msra.mxu0 %v840
    %v842 = vand.u32 %v76, 4294901760
    %v843 = vsub.f32 %v76, %v842
    %v844 = vand.u32 %v843, 4294901760
    %845 = vmatmul.f32.gmra.mxu0 %v844
    %v846 = vpop.f32.mrf.mxu0
    %v847 = vadd.f32 %v813, %v846
    %v848 = vand.u32 %v78, 4294901760
    %v849 = vsub.f32 %v78, %v848
    %v850 = vand.u32 %v849, 4294901760
    %851 = vmatmul.f32.gmra.mxu0 %v850
    %v852 = vpop.f32.mrf.mxu0
    %v853 = vadd.f32 %v818, %v852
    %v854 = vand.u32 %v80, 4294901760
    %v855 = vsub.f32 %v80, %v854
    %v856 = vand.u32 %v855, 4294901760
    %857 = vmatmul.f32.gmra.mxu0 %v856
    %v858 = vpop.f32.mrf.mxu0
    %v859 = vadd.f32 %v823, %v858
    %860 = vdwg.mxu0
    %861 = vmatpush.msra.mxu0 0.0
    %862 = vmatpush.msra.mxu0 0.0
    %863 = vmatpush.msra.mxu0 0.0
    %864 = vmatpush.msra.mxu0 0.0
    %865 = vmatpush.msra.mxu0 0.0
    %866 = vmatpush.msra.mxu0 0.0
    %867 = vmatpush.msra.mxu0 0.0
    %868 = vmatpush.msra.mxu0 0.0
    %869 = vmatpush.msra.mxu0 0.0
    %870 = vmatpush.msra.mxu0 0.0
    %871 = vmatpush.msra.mxu0 0.0
    %872 = vmatpush.msra.mxu0 0.0
    %873 = vmatpush.msra.mxu0 0.0
    %874 = vmatpush.msra.mxu0 0.0
    %875 = vmatpush.msra.mxu0 0.0
    %v876 = vand.u32 %v89, 4294901760
    %v877 = vsub.f32 %v89, %v876
    %v878 = vand.u32 %v877, 4294901760
    %879 = vmatpush.msra.mxu0 %v878
    %v880 = vand.u32 %v76, 4294901760
    %881 = vmatmul.f32.gmra.mxu0 %v880
    %v882 = vpop.f32.mrf.mxu0
    %v883 = vadd.f32 %v847, %v882
    %v884 = vand.u32 %v78, 4294901760
    %885 = vmatmul.f32.gmra.mxu0 %v884
    %v886 = vpop.f32.mrf.mxu0
    %v887 = vadd.f32 %v853, %v886
    %v888 = vand.u32 %v80, 4294901760
    %889 = vmatmul.f32.gmra.mxu0 %v888
    %v890 = vpop.f32.mrf.mxu0
    %v891 = vadd.f32 %v859, %v890
    %892 = vdwg.mxu0
    %893 = vmatpush.msra.mxu0 0.0
    %894 = vmatpush.msra.mxu0 0.0
    %895 = vmatpush.msra.mxu0 0.0
    %896 = vmatpush.msra.mxu0 0.0
    %897 = vmatpush.msra.mxu0 0.0
    %898 = vmatpush.msra.mxu0 0.0
    %899 = vmatpush.msra.mxu0 0.0
    %900 = vmatpush.msra.mxu0 0.0
    %901 = vmatpush.msra.mxu0 0.0
    %902 = vmatpush.msra.mxu0 0.0
    %903 = vmatpush.msra.mxu0 0.0
    %904 = vmatpush.msra.mxu0 0.0
    %905 = vmatpush.msra.mxu0 0.0
    %906 = vmatpush.msra.mxu0 0.0
    %907 = vmatpush.msra.mxu0 0.0
    %v908 = vand.u32 %v89, 4294901760
    %909 = vmatpush.msra.mxu0 %v908
    %v910 = vand.u32 %v76, 4294901760
    %911 = vmatmul.f32.gmra.mxu0 %v910
    %v912 = vpop.f32.mrf.mxu0
    %v913 = vadd.f32 %v883, %v912
    %v914 = vand.u32 %v78, 4294901760
    %915 = vmatmul.f32.gmra.mxu0 %v914
    %v916 = vpop.f32.mrf.mxu0
    %v917 = vadd.f32 %v887, %v916
    %v918 = vand.u32 %v80, 4294901760
    %919 = vmatmul.f32.gmra.mxu0 %v918
    %v920 = vpop.f32.mrf.mxu0
    %v921 = vadd.f32 %v891, %v920
    %922 = vdwg.mxu0
    %v923 = vtanh.pop %v289
    %v924 = vtanh.pop %v497
    %v925 = vtanh.pop %v705
    %v926 = vtanh.pop %v913
    %v927 = vtanh.pop %v293
    %v928 = vtanh.pop %v501
    %v929 = vtanh.pop %v709
    %v930 = vtanh.pop %v917
    %v931 = vtanh.pop %v297
    %v932 = vtanh.pop %v505
    %v933 = vtanh.pop %v713
    %v934 = vtanh.pop %v921
    %935 = vset.pattern.permute.xlu0 23
    %936 = vperm.xlu0 %935, %v43
    %v937 = vpop.permute.xlu0 %936
    %939 = vset.pattern.permute.xlu0 23
    %940 = vperm.xlu0 %939, %v44
    %v941 = vpop.permute.xlu0 %940
    %943 = vset.pattern.permute.xlu0 23
    %944 = vperm.xlu0 %943, %v45
    %v945 = vpop.permute.xlu0 %944
    %vm947 = vcmask 162816
    %v948 = vsel %vm947, %v43, 0
    %v950 = vsel %vm947, %v44, 0
    %v952 = vsel %vm947, %v45, 0
    %vm954 = vcmask 1043456
    %v956 = vsel %vm954, %v931, 0
    %v959 = vsel %vm954, %v932, 0
    %v962 = vsel %vm954, %v933, 0
    %v965 = vsel %vm954, %v934, 0
    %967 = vmatpush.msra.mxu0 0.0
    %968 = vmatpush.msra.mxu0 0.0
    %969 = vmatpush.msra.mxu0 0.0
    %970 = vmatpush.msra.mxu0 0.0
    %971 = vmatpush.msra.mxu0 0.0
    %972 = vmatpush.msra.mxu0 0.0
    %973 = vmatpush.msra.mxu0 0.0
    %974 = vmatpush.msra.mxu0 0.0
    %975 = vmatpush.msra.mxu0 0.0
    %976 = vmatpush.msra.mxu0 0.0
    %977 = vmatpush.msra.mxu0 0.0
    %978 = vmatpush.msra.mxu0 0.0
    %979 = vmatpush.msra.mxu0 0.0
    %v980 = vand.u32 %v956, 4294901760
    %981 = vmatpush.msra.mxu0 %v980
    %v982 = vand.u32 %v927, 4294901760
    %983 = vmatpush.msra.mxu0 %v982
    %v984 = vand.u32 %v923, 4294901760
    %985 = vmatpush.msra.mxu0 %v984
    %v986 = vand.u32 %v948, 4294901760
    %v987 = vsub.f32 %v948, %v986
    %v988 = vand.u32 %v987, 4294901760
    %v989 = vsub.f32 %v987, %v988
    %v990 = vand.u32 %v989, 4294901760
    %991 = vmatmul.f32.gmra.mxu0 %v990
    %v992 = vpop.f32.mrf.mxu0
    %v993 = vadd.f32 %v937, %v992
    %v994 = vand.u32 %v950, 4294901760
    %v995 = vsub.f32 %v950, %v994
    %v996 = vand.u32 %v995, 4294901760
    %v997 = vsub.f32 %v995, %v996
    %v998 = vand.u32 %v997, 4294901760
    %999 = vmatmul.f32.gmra.mxu0 %v998
    %v1000 = vpop.f32.mrf.mxu0
    %v1001 = vadd.f32 %v941, %v1000
    %v1002 = vand.u32 %v952, 4294901760
    %v1003 = vsub.f32 %v952, %v1002
    %v1004 = vand.u32 %v1003, 4294901760
    %v1005 = vsub.f32 %v1003, %v1004
    %v1006 = vand.u32 %v1005, 4294901760
    %1007 = vmatmul.f32.gmra.mxu0 %v1006
    %v1008 = vpop.f32.mrf.mxu0
    %v1009 = vadd.f32 %v945, %v1008
    %1010 = vdwg.mxu0
    %1011 = vmatpush.msra.mxu0 0.0
    %1012 = vmatpush.msra.mxu0 0.0
    %1013 = vmatpush.msra.mxu0 0.0
    %1014 = vmatpush.msra.mxu0 0.0
    %1015 = vmatpush.msra.mxu0 0.0
    %1016 = vmatpush.msra.mxu0 0.0
    %1017 = vmatpush.msra.mxu0 0.0
    %1018 = vmatpush.msra.mxu0 0.0
    %1019 = vmatpush.msra.mxu0 0.0
    %1020 = vmatpush.msra.mxu0 0.0
    %1021 = vmatpush.msra.mxu0 0.0
    %1022 = vmatpush.msra.mxu0 0.0
    %1023 = vmatpush.msra.mxu0 0.0
    %v1024 = vand.u32 %v956, 4294901760
    %v1025 = vsub.f32 %v956, %v1024
    %v1026 = vand.u32 %v1025, 4294901760
    %v1027 = vsub.f32 %v1025, %v1026
    %v1028 = vand.u32 %v1027, 4294901760
    %1029 = vmatpush.msra.mxu0 %v1028
    %v1030 = vand.u32 %v927, 4294901760
    %v1031 = vsub.f32 %v927, %v1030
    %v1032 = vand.u32 %v1031, 4294901760
    %v1033 = vsub.f32 %v1031, %v1032
    %v1034 = vand.u32 %v1033, 4294901760
    %1035 = vmatpush.msra.mxu0 %v1034
    %v1036 = vand.u32 %v923, 4294901760
    %v1037 = vsub.f32 %v923, %v1036
    %v1038 = vand.u32 %v1037, 4294901760
    %v1039 = vsub.f32 %v1037, %v1038
    %v1040 = vand.u32 %v1039, 4294901760
    %1041 = vmatpush.msra.mxu0 %v1040
    %v1042 = vand.u32 %v948, 4294901760
    %1043 = vmatmul.f32.gmra.mxu0 %v1042
    %v1044 = vpop.f32.mrf.mxu0
    %v1045 = vadd.f32 %v993, %v1044
    %v1046 = vand.u32 %v950, 4294901760
    %1047 = vmatmul.f32.gmra.mxu0 %v1046
    %v1048 = vpop.f32.mrf.mxu0
    %v1049 = vadd.f32 %v1001, %v1048
    %v1050 = vand.u32 %v952, 4294901760
    %1051 = vmatmul.f32.gmra.mxu0 %v1050
    %v1052 = vpop.f32.mrf.mxu0
    %v1053 = vadd.f32 %v1009, %v1052
    %1054 = vdwg.mxu0
    %1055 = vmatpush.msra.mxu0 0.0
    %1056 = vmatpush.msra.mxu0 0.0
    %1057 = vmatpush.msra.mxu0 0.0
    %1058 = vmatpush.msra.mxu0 0.0
    %1059 = vmatpush.msra.mxu0 0.0
    %1060 = vmatpush.msra.mxu0 0.0
    %1061 = vmatpush.msra.mxu0 0.0
    %1062 = vmatpush.msra.mxu0 0.0
    %1063 = vmatpush.msra.mxu0 0.0
    %1064 = vmatpush.msra.mxu0 0.0
    %1065 = vmatpush.msra.mxu0 0.0
    %1066 = vmatpush.msra.mxu0 0.0
    %1067 = vmatpush.msra.mxu0 0.0
    %v1068 = vand.u32 %v956, 4294901760
    %v1069 = vsub.f32 %v956, %v1068
    %1070 = vmatpush.msra.mxu0 %v1069
    %v1071 = vand.u32 %v927, 4294901760
    %v1072 = vsub.f32 %v927, %v1071
    %1073 = vmatpush.msra.mxu0 %v1072
    %v1074 = vand.u32 %v923, 4294901760
    %v1075 = vsub.f32 %v923, %v1074
    %1076 = vmatpush.msra.mxu0 %v1075
    %v1077 = vand.u32 %v948, 4294901760
    %v1078 = vsub.f32 %v948, %v1077
    %1079 = vmatmul.f32.gmra.mxu0 %v1078
    %v1080 = vpop.f32.mrf.mxu0
    %v1081 = vadd.f32 %v1045, %v1080
    %v1082 = vand.u32 %v950, 4294901760
    %v1083 = vsub.f32 %v950, %v1082
    %1084 = vmatmul.f32.gmra.mxu0 %v1083
    %v1085 = vpop.f32.mrf.mxu0
    %v1086 = vadd.f32 %v1049, %v1085
    %v1087 = vand.u32 %v952, 4294901760
    %v1088 = vsub.f32 %v952, %v1087
    %1089 = vmatmul.f32.gmra.mxu0 %v1088
    %v1090 = vpop.f32.mrf.mxu0
    %v1091 = vadd.f32 %v1053, %v1090
    %1092 = vdwg.mxu0
    %1093 = vmatpush.msra.mxu0 0.0
    %1094 = vmatpush.msra.mxu0 0.0
    %1095 = vmatpush.msra.mxu0 0.0
    %1096 = vmatpush.msra.mxu0 0.0
    %1097 = vmatpush.msra.mxu0 0.0
    %1098 = vmatpush.msra.mxu0 0.0
    %1099 = vmatpush.msra.mxu0 0.0
    %1100 = vmatpush.msra.mxu0 0.0
    %1101 = vmatpush.msra.mxu0 0.0
    %1102 = vmatpush.msra.mxu0 0.0
    %1103 = vmatpush.msra.mxu0 0.0
    %1104 = vmatpush.msra.mxu0 0.0
    %1105 = vmatpush.msra.mxu0 0.0
    %v1106 = vand.u32 %v956, 4294901760
    %1107 = vmatpush.msra.mxu0 %v1106
    %v1108 = vand.u32 %v927, 4294901760
    %1109 = vmatpush.msra.mxu0 %v1108
    %v1110 = vand.u32 %v923, 4294901760
    %1111 = vmatpush.msra.mxu0 %v1110
    %v1112 = vand.u32 %v948, 4294901760
    %v1113 = vsub.f32 %v948, %v1112
    %v1114 = vand.u32 %v1113, 4294901760
    %1115 = vmatmul.f32.gmra.mxu0 %v1114
    %v1116 = vpop.f32.mrf.mxu0
    %v1117 = vadd.f32 %v1081, %v1116
    %v1118 = vand.u32 %v950, 4294901760
    %v1119 = vsub.f32 %v950, %v1118
    %v1120 = vand.u32 %v1119, 4294901760
    %1121 = vmatmul.f32.gmra.mxu0 %v1120
    %v1122 = vpop.f32.mrf.mxu0
    %v1123 = vadd.f32 %v1086, %v1122
    %v1124 = vand.u32 %v952, 4294901760
    %v1125 = vsub.f32 %v952, %v1124
    %v1126 = vand.u32 %v1125, 4294901760
    %1127 = vmatmul.f32.gmra.mxu0 %v1126
    %v1128 = vpop.f32.mrf.mxu0
    %v1129 = vadd.f32 %v1091, %v1128
    %1130 = vdwg.mxu0
    %1131 = vmatpush.msra.mxu0 0.0
    %1132 = vmatpush.msra.mxu0 0.0
    %1133 = vmatpush.msra.mxu0 0.0
    %1134 = vmatpush.msra.mxu0 0.0
    %1135 = vmatpush.msra.mxu0 0.0
    %1136 = vmatpush.msra.mxu0 0.0
    %1137 = vmatpush.msra.mxu0 0.0
    %1138 = vmatpush.msra.mxu0 0.0
    %1139 = vmatpush.msra.mxu0 0.0
    %1140 = vmatpush.msra.mxu0 0.0
    %1141 = vmatpush.msra.mxu0 0.0
    %1142 = vmatpush.msra.mxu0 0.0
    %1143 = vmatpush.msra.mxu0 0.0
    %v1144 = vand.u32 %v956, 4294901760
    %v1145 = vsub.f32 %v956, %v1144
    %v1146 = vand.u32 %v1145, 4294901760
    %1147 = vmatpush.msra.mxu0 %v1146
    %v1148 = vand.u32 %v927, 4294901760
    %v1149 = vsub.f32 %v927, %v1148
    %v1150 = vand.u32 %v1149, 4294901760
    %1151 = vmatpush.msra.mxu0 %v1150
    %v1152 = vand.u32 %v923, 4294901760
    %v1153 = vsub.f32 %v923, %v1152
    %v1154 = vand.u32 %v1153, 4294901760
    %1155 = vmatpush.msra.mxu0 %v1154
    %v1156 = vand.u32 %v948, 4294901760
    %1157 = vmatmul.f32.gmra.mxu0 %v1156
    %v1158 = vpop.f32.mrf.mxu0
    %v1159 = vadd.f32 %v1117, %v1158
    %v1160 = vand.u32 %v950, 4294901760
    %1161 = vmatmul.f32.gmra.mxu0 %v1160
    %v1162 = vpop.f32.mrf.mxu0
    %v1163 = vadd.f32 %v1123, %v1162
    %v1164 = vand.u32 %v952, 4294901760
    %1165 = vmatmul.f32.gmra.mxu0 %v1164
    %v1166 = vpop.f32.mrf.mxu0
    %v1167 = vadd.f32 %v1129, %v1166
    %1168 = vdwg.mxu0
    %1169 = vmatpush.msra.mxu0 0.0
    %1170 = vmatpush.msra.mxu0 0.0
    %1171 = vmatpush.msra.mxu0 0.0
    %1172 = vmatpush.msra.mxu0 0.0
    %1173 = vmatpush.msra.mxu0 0.0
    %1174 = vmatpush.msra.mxu0 0.0
    %1175 = vmatpush.msra.mxu0 0.0
    %1176 = vmatpush.msra.mxu0 0.0
    %1177 = vmatpush.msra.mxu0 0.0
    %1178 = vmatpush.msra.mxu0 0.0
    %1179 = vmatpush.msra.mxu0 0.0
    %1180 = vmatpush.msra.mxu0 0.0
    %1181 = vmatpush.msra.mxu0 0.0
    %v1182 = vand.u32 %v956, 4294901760
    %1183 = vmatpush.msra.mxu0 %v1182
    %v1184 = vand.u32 %v927, 4294901760
    %1185 = vmatpush.msra.mxu0 %v1184
    %v1186 = vand.u32 %v923, 4294901760
    %1187 = vmatpush.msra.mxu0 %v1186
    %v1188 = vand.u32 %v948, 4294901760
    %1189 = vmatmul.f32.gmra.mxu0 %v1188
    %v1190 = vpop.f32.mrf.mxu0
    %v1191 = vadd.f32 %v1159, %v1190
    %v1192 = vand.u32 %v950, 4294901760
    %1193 = vmatmul.f32.gmra.mxu0 %v1192
    %v1194 = vpop.f32.mrf.mxu0
    %v1195 = vadd.f32 %v1163, %v1194
    %v1196 = vand.u32 %v952, 4294901760
    %1197 = vmatmul.f32.gmra.mxu0 %v1196
    %v1198 = vpop.f32.mrf.mxu0
    %v1199 = vadd.f32 %v1167, %v1198
    %1200 = vdwg.mxu0
    %1201 = vmatpush.msra.mxu0 0.0
    %1202 = vmatpush.msra.mxu0 0.0
    %1203 = vmatpush.msra.mxu0 0.0
    %1204 = vmatpush.msra.mxu0 0.0
    %1205 = vmatpush.msra.mxu0 0.0
    %1206 = vmatpush.msra.mxu0 0.0
    %1207 = vmatpush.msra.mxu0 0.0
    %1208 = vmatpush.msra.mxu0 0.0
    %1209 = vmatpush.msra.mxu0 0.0
    %1210 = vmatpush.msra.mxu0 0.0
    %1211 = vmatpush.msra.mxu0 0.0
    %1212 = vmatpush.msra.mxu0 0.0
    %1213 = vmatpush.msra.mxu0 0.0
    %v1214 = vand.u32 %v959, 4294901760
    %1215 = vmatpush.msra.mxu0 %v1214
    %v1216 = vand.u32 %v928, 4294901760
    %1217 = vmatpush.msra.mxu0 %v1216
    %v1218 = vand.u32 %v924, 4294901760
    %1219 = vmatpush.msra.mxu0 %v1218
    %v1220 = vand.u32 %v948, 4294901760
    %v1221 = vsub.f32 %v948, %v1220
    %v1222 = vand.u32 %v1221, 4294901760
    %v1223 = vsub.f32 %v1221, %v1222
    %v1224 = vand.u32 %v1223, 4294901760
    %1225 = vmatmul.f32.gmra.mxu0 %v1224
    %v1226 = vpop.f32.mrf.mxu0
    %v1227 = vadd.f32 %v937, %v1226
    %v1228 = vand.u32 %v950, 4294901760
    %v1229 = vsub.f32 %v950, %v1228
    %v1230 = vand.u32 %v1229, 4294901760
    %v1231 = vsub.f32 %v1229, %v1230
    %v1232 = vand.u32 %v1231, 4294901760
    %1233 = vmatmul.f32.gmra.mxu0 %v1232
    %v1234 = vpop.f32.mrf.mxu0
    %v1235 = vadd.f32 %v941, %v1234
    %v1236 = vand.u32 %v952, 4294901760
    %v1237 = vsub.f32 %v952, %v1236
    %v1238 = vand.u32 %v1237, 4294901760
    %v1239 = vsub.f32 %v1237, %v1238
    %v1240 = vand.u32 %v1239, 4294901760
    %1241 = vmatmul.f32.gmra.mxu0 %v1240
    %v1242 = vpop.f32.mrf.mxu0
    %v1243 = vadd.f32 %v945, %v1242
    %1244 = vdwg.mxu0
    %1245 = vmatpush.msra.mxu0 0.0
    %1246 = vmatpush.msra.mxu0 0.0
    %1247 = vmatpush.msra.mxu0 0.0
    %1248 = vmatpush.msra.mxu0 0.0
    %1249 = vmatpush.msra.mxu0 0.0
    %1250 = vmatpush.msra.mxu0 0.0
    %1251 = vmatpush.msra.mxu0 0.0
    %1252 = vmatpush.msra.mxu0 0.0
    %1253 = vmatpush.msra.mxu0 0.0
    %1254 = vmatpush.msra.mxu0 0.0
    %1255 = vmatpush.msra.mxu0 0.0
    %1256 = vmatpush.msra.mxu0 0.0
    %1257 = vmatpush.msra.mxu0 0.0
    %v1258 = vand.u32 %v959, 4294901760
    %v1259 = vsub.f32 %v959, %v1258
    %v1260 = vand.u32 %v1259, 4294901760
    %v1261 = vsub.f32 %v1259, %v1260
    %v1262 = vand.u32 %v1261, 4294901760
    %1263 = vmatpush.msra.mxu0 %v1262
    %v1264 = vand.u32 %v928, 4294901760
    %v1265 = vsub.f32 %v928, %v1264
    %v1266 = vand.u32 %v1265, 4294901760
    %v1267 = vsub.f32 %v1265, %v1266
    %v1268 = vand.u32 %v1267, 4294901760
    %1269 = vmatpush.msra.mxu0 %v1268
    %v1270 = vand.u32 %v924, 4294901760
    %v1271 = vsub.f32 %v924, %v1270
    %v1272 = vand.u32 %v1271, 4294901760
    %v1273 = vsub.f32 %v1271, %v1272
    %v1274 = vand.u32 %v1273, 4294901760
    %1275 = vmatpush.msra.mxu0 %v1274
    %v1276 = vand.u32 %v948, 4294901760
    %1277 = vmatmul.f32.gmra.mxu0 %v1276
    %v1278 = vpop.f32.mrf.mxu0
    %v1279 = vadd.f32 %v1227, %v1278
    %v1280 = vand.u32 %v950, 4294901760
    %1281 = vmatmul.f32.gmra.mxu0 %v1280
    %v1282 = vpop.f32.mrf.mxu0
    %v1283 = vadd.f32 %v1235, %v1282
    %v1284 = vand.u32 %v952, 4294901760
    %1285 = vmatmul.f32.gmra.mxu0 %v1284
    %v1286 = vpop.f32.mrf.mxu0
    %v1287 = vadd.f32 %v1243, %v1286
    %1288 = vdwg.mxu0
    %1289 = vmatpush.msra.mxu0 0.0
    %1290 = vmatpush.msra.mxu0 0.0
    %1291 = vmatpush.msra.mxu0 0.0
    %1292 = vmatpush.msra.mxu0 0.0
    %1293 = vmatpush.msra.mxu0 0.0
    %1294 = vmatpush.msra.mxu0 0.0
    %1295 = vmatpush.msra.mxu0 0.0
    %1296 = vmatpush.msra.mxu0 0.0
    %1297 = vmatpush.msra.mxu0 0.0
    %1298 = vmatpush.msra.mxu0 0.0
    %1299 = vmatpush.msra.mxu0 0.0
    %1300 = vmatpush.msra.mxu0 0.0
    %1301 = vmatpush.msra.mxu0 0.0
    %v1302 = vand.u32 %v959, 4294901760
    %v1303 = vsub.f32 %v959, %v1302
    %1304 = vmatpush.msra.mxu0 %v1303
    %v1305 = vand.u32 %v928, 4294901760
    %v1306 = vsub.f32 %v928, %v1305
    %1307 = vmatpush.msra.mxu0 %v1306
    %v1308 = vand.u32 %v924, 4294901760
    %v1309 = vsub.f32 %v924, %v1308
    %1310 = vmatpush.msra.mxu0 %v1309
    %v1311 = vand.u32 %v948, 4294901760
    %v1312 = vsub.f32 %v948, %v1311
    %1313 = vmatmul.f32.gmra.mxu0 %v1312
    %v1314 = vpop.f32.mrf.mxu0
    %v1315 = vadd.f32 %v1279, %v1314
    %v1316 = vand.u32 %v950, 4294901760
    %v1317 = vsub.f32 %v950, %v1316
    %1318 = vmatmul.f32.gmra.mxu0 %v1317
    %v1319 = vpop.f32.mrf.mxu0
    %v1320 = vadd.f32 %v1283, %v1319
    %v1321 = vand.u32 %v952, 4294901760
    %v1322 = vsub.f32 %v952, %v1321
    %1323 = vmatmul.f32.gmra.mxu0 %v1322
    %v1324 = vpop.f32.mrf.mxu0
    %v1325 = vadd.f32 %v1287, %v1324
    %1326 = vdwg.mxu0
    %1327 = vmatpush.msra.mxu0 0.0
    %1328 = vmatpush.msra.mxu0 0.0
    %1329 = vmatpush.msra.mxu0 0.0
    %1330 = vmatpush.msra.mxu0 0.0
    %1331 = vmatpush.msra.mxu0 0.0
    %1332 = vmatpush.msra.mxu0 0.0
    %1333 = vmatpush.msra.mxu0 0.0
    %1334 = vmatpush.msra.mxu0 0.0
    %1335 = vmatpush.msra.mxu0 0.0
    %1336 = vmatpush.msra.mxu0 0.0
    %1337 = vmatpush.msra.mxu0 0.0
    %1338 = vmatpush.msra.mxu0 0.0
    %1339 = vmatpush.msra.mxu0 0.0
    %v1340 = vand.u32 %v959, 4294901760
    %1341 = vmatpush.msra.mxu0 %v1340
    %v1342 = vand.u32 %v928, 4294901760
    %1343 = vmatpush.msra.mxu0 %v1342
    %v1344 = vand.u32 %v924, 4294901760
    %1345 = vmatpush.msra.mxu0 %v1344
    %v1346 = vand.u32 %v948, 4294901760
    %v1347 = vsub.f32 %v948, %v1346
    %v1348 = vand.u32 %v1347, 4294901760
    %1349 = vmatmul.f32.gmra.mxu0 %v1348
    %v1350 = vpop.f32.mrf.mxu0
    %v1351 = vadd.f32 %v1315, %v1350
    %v1352 = vand.u32 %v950, 4294901760
    %v1353 = vsub.f32 %v950, %v1352
    %v1354 = vand.u32 %v1353, 4294901760
    %1355 = vmatmul.f32.gmra.mxu0 %v1354
    %v1356 = vpop.f32.mrf.mxu0
    %v1357 = vadd.f32 %v1320, %v1356
    %v1358 = vand.u32 %v952, 4294901760
    %v1359 = vsub.f32 %v952, %v1358
    %v1360 = vand.u32 %v1359, 4294901760
    %1361 = vmatmul.f32.gmra.mxu0 %v1360
    %v1362 = vpop.f32.mrf.mxu0
    %v1363 = vadd.f32 %v1325, %v1362
    %1364 = vdwg.mxu0
    %1365 = vmatpush.msra.mxu0 0.0
    %1366 = vmatpush.msra.mxu0 0.0
    %1367 = vmatpush.msra.mxu0 0.0
    %1368 = vmatpush.msra.mxu0 0.0
    %1369 = vmatpush.msra.mxu0 0.0
    %1370 = vmatpush.msra.mxu0 0.0
    %1371 = vmatpush.msra.mxu0 0.0
    %1372 = vmatpush.msra.mxu0 0.0
    %1373 = vmatpush.msra.mxu0 0.0
    %1374 = vmatpush.msra.mxu0 0.0
    %1375 = vmatpush.msra.mxu0 0.0
    %1376 = vmatpush.msra.mxu0 0.0
    %1377 = vmatpush.msra.mxu0 0.0
    %v1378 = vand.u32 %v959, 4294901760
    %v1379 = vsub.f32 %v959, %v1378
    %v1380 = vand.u32 %v1379, 4294901760
    %1381 = vmatpush.msra.mxu0 %v1380
    %v1382 = vand.u32 %v928, 4294901760
    %v1383 = vsub.f32 %v928, %v1382
    %v1384 = vand.u32 %v1383, 4294901760
    %1385 = vmatpush.msra.mxu0 %v1384
    %v1386 = vand.u32 %v924, 4294901760
    %v1387 = vsub.f32 %v924, %v1386
    %v1388 = vand.u32 %v1387, 4294901760
    %1389 = vmatpush.msra.mxu0 %v1388
    %v1390 = vand.u32 %v948, 4294901760
    %1391 = vmatmul.f32.gmra.mxu0 %v1390
    %v1392 = vpop.f32.mrf.mxu0
    %v1393 = vadd.f32 %v1351, %v1392
    %v1394 = vand.u32 %v950, 4294901760
    %1395 = vmatmul.f32.gmra.mxu0 %v1394
    %v1396 = vpop.f32.mrf.mxu0
    %v1397 = vadd.f32 %v1357, %v1396
    %v1398 = vand.u32 %v952, 4294901760
    %1399 = vmatmul.f32.gmra.mxu0 %v1398
    %v1400 = vpop.f32.mrf.mxu0
    %v1401 = vadd.f32 %v1363, %v1400
    %1402 = vdwg.mxu0
    %1403 = vmatpush.msra.mxu0 0.0
    %1404 = vmatpush.msra.mxu0 0.0
    %1405 = vmatpush.msra.mxu0 0.0
    %1406 = vmatpush.msra.mxu0 0.0
    %1407 = vmatpush.msra.mxu0 0.0
    %1408 = vmatpush.msra.mxu0 0.0
    %1409 = vmatpush.msra.mxu0 0.0
    %1410 = vmatpush.msra.mxu0 0.0
    %1411 = vmatpush.msra.mxu0 0.0
    %1412 = vmatpush.msra.mxu0 0.0
    %1413 = vmatpush.msra.mxu0 0.0
    %1414 = vmatpush.msra.mxu0 0.0
    %1415 = vmatpush.msra.mxu0 0.0
    %v1416 = vand.u32 %v959, 4294901760
    %1417 = vmatpush.msra.mxu0 %v1416
    %v1418 = vand.u32 %v928, 4294901760
    %1419 = vmatpush.msra.mxu0 %v1418
    %v1420 = vand.u32 %v924, 4294901760
    %1421 = vmatpush.msra.mxu0 %v1420
    %v1422 = vand.u32 %v948, 4294901760
    %1423 = vmatmul.f32.gmra.mxu0 %v1422
    %v1424 = vpop.f32.mrf.mxu0
    %v1425 = vadd.f32 %v1393, %v1424
    %v1426 = vand.u32 %v950, 4294901760
    %1427 = vmatmul.f32.gmra.mxu0 %v1426
    %v1428 = vpop.f32.mrf.mxu0
    %v1429 = vadd.f32 %v1397, %v1428
    %v1430 = vand.u32 %v952, 4294901760
    %1431 = vmatmul.f32.gmra.mxu0 %v1430
    %v1432 = vpop.f32.mrf.mxu0
    %v1433 = vadd.f32 %v1401, %v1432
    %1434 = vdwg.mxu0
    %1435 = vmatpush.msra.mxu0 0.0
    %1436 = vmatpush.msra.mxu0 0.0
    %1437 = vmatpush.msra.mxu0 0.0
    %1438 = vmatpush.msra.mxu0 0.0
    %1439 = vmatpush.msra.mxu0 0.0
    %1440 = vmatpush.msra.mxu0 0.0
    %1441 = vmatpush.msra.mxu0 0.0
    %1442 = vmatpush.msra.mxu0 0.0
    %1443 = vmatpush.msra.mxu0 0.0
    %1444 = vmatpush.msra.mxu0 0.0
    %1445 = vmatpush.msra.mxu0 0.0
    %1446 = vmatpush.msra.mxu0 0.0
    %1447 = vmatpush.msra.mxu0 0.0
    %v1448 = vand.u32 %v962, 4294901760
    %1449 = vmatpush.msra.mxu0 %v1448
    %v1450 = vand.u32 %v929, 4294901760
    %1451 = vmatpush.msra.mxu0 %v1450
    %v1452 = vand.u32 %v925, 4294901760
    %1453 = vmatpush.msra.mxu0 %v1452
    %v1454 = vand.u32 %v948, 4294901760
    %v1455 = vsub.f32 %v948, %v1454
    %v1456 = vand.u32 %v1455, 4294901760
    %v1457 = vsub.f32 %v1455, %v1456
    %v1458 = vand.u32 %v1457, 4294901760
    %1459 = vmatmul.f32.gmra.mxu0 %v1458
    %v1460 = vpop.f32.mrf.mxu0
    %v1461 = vadd.f32 %v937, %v1460
    %v1462 = vand.u32 %v950, 4294901760
    %v1463 = vsub.f32 %v950, %v1462
    %v1464 = vand.u32 %v1463, 4294901760
    %v1465 = vsub.f32 %v1463, %v1464
    %v1466 = vand.u32 %v1465, 4294901760
    %1467 = vmatmul.f32.gmra.mxu0 %v1466
    %v1468 = vpop.f32.mrf.mxu0
    %v1469 = vadd.f32 %v941, %v1468
    %v1470 = vand.u32 %v952, 4294901760
    %v1471 = vsub.f32 %v952, %v1470
    %v1472 = vand.u32 %v1471, 4294901760
    %v1473 = vsub.f32 %v1471, %v1472
    %v1474 = vand.u32 %v1473, 4294901760
    %1475 = vmatmul.f32.gmra.mxu0 %v1474
    %v1476 = vpop.f32.mrf.mxu0
    %v1477 = vadd.f32 %v945, %v1476
    %1478 = vdwg.mxu0
    %1479 = vmatpush.msra.mxu0 0.0
    %1480 = vmatpush.msra.mxu0 0.0
    %1481 = vmatpush.msra.mxu0 0.0
    %1482 = vmatpush.msra.mxu0 0.0
    %1483 = vmatpush.msra.mxu0 0.0
    %1484 = vmatpush.msra.mxu0 0.0
    %1485 = vmatpush.msra.mxu0 0.0
    %1486 = vmatpush.msra.mxu0 0.0
    %1487 = vmatpush.msra.mxu0 0.0
    %1488 = vmatpush.msra.mxu0 0.0
    %1489 = vmatpush.msra.mxu0 0.0
    %1490 = vmatpush.msra.mxu0 0.0
    %1491 = vmatpush.msra.mxu0 0.0
    %v1492 = vand.u32 %v962, 4294901760
    %v1493 = vsub.f32 %v962, %v1492
    %v1494 = vand.u32 %v1493, 4294901760
    %v1495 = vsub.f32 %v1493, %v1494
    %v1496 = vand.u32 %v1495, 4294901760
    %1497 = vmatpush.msra.mxu0 %v1496
    %v1498 = vand.u32 %v929, 4294901760
    %v1499 = vsub.f32 %v929, %v1498
    %v1500 = vand.u32 %v1499, 4294901760
    %v1501 = vsub.f32 %v1499, %v1500
    %v1502 = vand.u32 %v1501, 4294901760
    %1503 = vmatpush.msra.mxu0 %v1502
    %v1504 = vand.u32 %v925, 4294901760
    %v1505 = vsub.f32 %v925, %v1504
    %v1506 = vand.u32 %v1505, 4294901760
    %v1507 = vsub.f32 %v1505, %v1506
    %v1508 = vand.u32 %v1507, 4294901760
    %1509 = vmatpush.msra.mxu0 %v1508
    %v1510 = vand.u32 %v948, 4294901760
    %1511 = vmatmul.f32.gmra.mxu0 %v1510
    %v1512 = vpop.f32.mrf.mxu0
    %v1513 = vadd.f32 %v1461, %v1512
    %v1514 = vand.u32 %v950, 4294901760
    %1515 = vmatmul.f32.gmra.mxu0 %v1514
    %v1516 = vpop.f32.mrf.mxu0
    %v1517 = vadd.f32 %v1469, %v1516
    %v1518 = vand.u32 %v952, 4294901760
    %1519 = vmatmul.f32.gmra.mxu0 %v1518
    %v1520 = vpop.f32.mrf.mxu0
    %v1521 = vadd.f32 %v1477, %v1520
    %1522 = vdwg.mxu0
    %1523 = vmatpush.msra.mxu0 0.0
    %1524 = vmatpush.msra.mxu0 0.0
    %1525 = vmatpush.msra.mxu0 0.0
    %1526 = vmatpush.msra.mxu0 0.0
    %1527 = vmatpush.msra.mxu0 0.0
    %1528 = vmatpush.msra.mxu0 0.0
    %1529 = vmatpush.msra.mxu0 0.0
    %1530 = vmatpush.msra.mxu0 0.0
    %1531 = vmatpush.msra.mxu0 0.0
    %1532 = vmatpush.msra.mxu0 0.0
    %1533 = vmatpush.msra.mxu0 0.0
    %1534 = vmatpush.msra.mxu0 0.0
    %1535 = vmatpush.msra.mxu0 0.0
    %v1536 = vand.u32 %v962, 4294901760
    %v1537 = vsub.f32 %v962, %v1536
    %1538 = vmatpush.msra.mxu0 %v1537
    %v1539 = vand.u32 %v929, 4294901760
    %v1540 = vsub.f32 %v929, %v1539
    %1541 = vmatpush.msra.mxu0 %v1540
    %v1542 = vand.u32 %v925, 4294901760
    %v1543 = vsub.f32 %v925, %v1542
    %1544 = vmatpush.msra.mxu0 %v1543
    %v1545 = vand.u32 %v948, 4294901760
    %v1546 = vsub.f32 %v948, %v1545
    %1547 = vmatmul.f32.gmra.mxu0 %v1546
    %v1548 = vpop.f32.mrf.mxu0
    %v1549 = vadd.f32 %v1513, %v1548
    %v1550 = vand.u32 %v950, 4294901760
    %v1551 = vsub.f32 %v950, %v1550
    %1552 = vmatmul.f32.gmra.mxu0 %v1551
    %v1553 = vpop.f32.mrf.mxu0
    %v1554 = vadd.f32 %v1517, %v1553
    %v1555 = vand.u32 %v952, 4294901760
    %v1556 = vsub.f32 %v952, %v1555
    %1557 = vmatmul.f32.gmra.mxu0 %v1556
    %v1558 = vpop.f32.mrf.mxu0
    %v1559 = vadd.f32 %v1521, %v1558
    %1560 = vdwg.mxu0
    %1561 = vmatpush.msra.mxu0 0.0
    %1562 = vmatpush.msra.mxu0 0.0
    %1563 = vmatpush.msra.mxu0 0.0
    %1564 = vmatpush.msra.mxu0 0.0
    %1565 = vmatpush.msra.mxu0 0.0
    %1566 = vmatpush.msra.mxu0 0.0
    %1567 = vmatpush.msra.mxu0 0.0
    %1568 = vmatpush.msra.mxu0 0.0
    %1569 = vmatpush.msra.mxu0 0.0
    %1570 = vmatpush.msra.mxu0 0.0
    %1571 = vmatpush.msra.mxu0 0.0
    %1572 = vmatpush.msra.mxu0 0.0
    %1573 = vmatpush.msra.mxu0 0.0
    %v1574 = vand.u32 %v962, 4294901760
    %1575 = vmatpush.msra.mxu0 %v1574
    %v1576 = vand.u32 %v929, 4294901760
    %1577 = vmatpush.msra.mxu0 %v1576
    %v1578 = vand.u32 %v925, 4294901760
    %1579 = vmatpush.msra.mxu0 %v1578
    %v1580 = vand.u32 %v948, 4294901760
    %v1581 = vsub.f32 %v948, %v1580
    %v1582 = vand.u32 %v1581, 4294901760
    %1583 = vmatmul.f32.gmra.mxu0 %v1582
    %v1584 = vpop.f32.mrf.mxu0
    %v1585 = vadd.f32 %v1549, %v1584
    %v1586 = vand.u32 %v950, 4294901760
    %v1587 = vsub.f32 %v950, %v1586
    %v1588 = vand.u32 %v1587, 4294901760
    %1589 = vmatmul.f32.gmra.mxu0 %v1588
    %v1590 = vpop.f32.mrf.mxu0
    %v1591 = vadd.f32 %v1554, %v1590
    %v1592 = vand.u32 %v952, 4294901760
    %v1593 = vsub.f32 %v952, %v1592
    %v1594 = vand.u32 %v1593, 4294901760
    %1595 = vmatmul.f32.gmra.mxu0 %v1594
    %v1596 = vpop.f32.mrf.mxu0
    %v1597 = vadd.f32 %v1559, %v1596
    %1598 = vdwg.mxu0
    %1599 = vmatpush.msra.mxu0 0.0
    %1600 = vmatpush.msra.mxu0 0.0
    %1601 = vmatpush.msra.mxu0 0.0
    %1602 = vmatpush.msra.mxu0 0.0
    %1603 = vmatpush.msra.mxu0 0.0
    %1604 = vmatpush.msra.mxu0 0.0
    %1605 = vmatpush.msra.mxu0 0.0
    %1606 = vmatpush.msra.mxu0 0.0
    %1607 = vmatpush.msra.mxu0 0.0
    %1608 = vmatpush.msra.mxu0 0.0
    %1609 = vmatpush.msra.mxu0 0.0
    %1610 = vmatpush.msra.mxu0 0.0
    %1611 = vmatpush.msra.mxu0 0.0
    %v1612 = vand.u32 %v962, 4294901760
    %v1613 = vsub.f32 %v962, %v1612
    %v1614 = vand.u32 %v1613, 4294901760
    %1615 = vmatpush.msra.mxu0 %v1614
    %v1616 = vand.u32 %v929, 4294901760
    %v1617 = vsub.f32 %v929, %v1616
    %v1618 = vand.u32 %v1617, 4294901760
    %1619 = vmatpush.msra.mxu0 %v1618
    %v1620 = vand.u32 %v925, 4294901760
    %v1621 = vsub.f32 %v925, %v1620
    %v1622 = vand.u32 %v1621, 4294901760
    %1623 = vmatpush.msra.mxu0 %v1622
    %v1624 = vand.u32 %v948, 4294901760
    %1625 = vmatmul.f32.gmra.mxu0 %v1624
    %v1626 = vpop.f32.mrf.mxu0
    %v1627 = vadd.f32 %v1585, %v1626
    %v1628 = vand.u32 %v950, 4294901760
    %1629 = vmatmul.f32.gmra.mxu0 %v1628
    %v1630 = vpop.f32.mrf.mxu0
    %v1631 = vadd.f32 %v1591, %v1630
    %v1632 = vand.u32 %v952, 4294901760
    %1633 = vmatmul.f32.gmra.mxu0 %v1632
    %v1634 = vpop.f32.mrf.mxu0
    %v1635 = vadd.f32 %v1597, %v1634
    %1636 = vdwg.mxu0
    %1637 = vmatpush.msra.mxu0 0.0
    %1638 = vmatpush.msra.mxu0 0.0
    %1639 = vmatpush.msra.mxu0 0.0
    %1640 = vmatpush.msra.mxu0 0.0
    %1641 = vmatpush.msra.mxu0 0.0
    %1642 = vmatpush.msra.mxu0 0.0
    %1643 = vmatpush.msra.mxu0 0.0
    %1644 = vmatpush.msra.mxu0 0.0
    %1645 = vmatpush.msra.mxu0 0.0
    %1646 = vmatpush.msra.mxu0 0.0
    %1647 = vmatpush.msra.mxu0 0.0
    %1648 = vmatpush.msra.mxu0 0.0
    %1649 = vmatpush.msra.mxu0 0.0
    %v1650 = vand.u32 %v962, 4294901760
    %1651 = vmatpush.msra.mxu0 %v1650
    %v1652 = vand.u32 %v929, 4294901760
    %1653 = vmatpush.msra.mxu0 %v1652
    %v1654 = vand.u32 %v925, 4294901760
    %1655 = vmatpush.msra.mxu0 %v1654
    %v1656 = vand.u32 %v948, 4294901760
    %1657 = vmatmul.f32.gmra.mxu0 %v1656
    %v1658 = vpop.f32.mrf.mxu0
    %v1659 = vadd.f32 %v1627, %v1658
    %v1660 = vand.u32 %v950, 4294901760
    %1661 = vmatmul.f32.gmra.mxu0 %v1660
    %v1662 = vpop.f32.mrf.mxu0
    %v1663 = vadd.f32 %v1631, %v1662
    %v1664 = vand.u32 %v952, 4294901760
    %1665 = vmatmul.f32.gmra.mxu0 %v1664
    %v1666 = vpop.f32.mrf.mxu0
    %v1667 = vadd.f32 %v1635, %v1666
    %1668 = vdwg.mxu0
    %1669 = vmatpush.msra.mxu0 0.0
    %1670 = vmatpush.msra.mxu0 0.0
    %1671 = vmatpush.msra.mxu0 0.0
    %1672 = vmatpush.msra.mxu0 0.0
    %1673 = vmatpush.msra.mxu0 0.0
    %1674 = vmatpush.msra.mxu0 0.0
    %1675 = vmatpush.msra.mxu0 0.0
    %1676 = vmatpush.msra.mxu0 0.0
    %1677 = vmatpush.msra.mxu0 0.0
    %1678 = vmatpush.msra.mxu0 0.0
    %1679 = vmatpush.msra.mxu0 0.0
    %1680 = vmatpush.msra.mxu0 0.0
    %1681 = vmatpush.msra.mxu0 0.0
    %v1682 = vand.u32 %v965, 4294901760
    %1683 = vmatpush.msra.mxu0 %v1682
    %v1684 = vand.u32 %v930, 4294901760
    %1685 = vmatpush.msra.mxu0 %v1684
    %v1686 = vand.u32 %v926, 4294901760
    %1687 = vmatpush.msra.mxu0 %v1686
    %v1688 = vand.u32 %v948, 4294901760
    %v1689 = vsub.f32 %v948, %v1688
    %v1690 = vand.u32 %v1689, 4294901760
    %v1691 = vsub.f32 %v1689, %v1690
    %v1692 = vand.u32 %v1691, 4294901760
    %1693 = vmatmul.f32.gmra.mxu0 %v1692
    %v1694 = vpop.f32.mrf.mxu0
    %v1695 = vadd.f32 %v937, %v1694
    %v1696 = vand.u32 %v950, 4294901760
    %v1697 = vsub.f32 %v950, %v1696
    %v1698 = vand.u32 %v1697, 4294901760
    %v1699 = vsub.f32 %v1697, %v1698
    %v1700 = vand.u32 %v1699, 4294901760
    %1701 = vmatmul.f32.gmra.mxu0 %v1700
    %v1702 = vpop.f32.mrf.mxu0
    %v1703 = vadd.f32 %v941, %v1702
    %v1704 = vand.u32 %v952, 4294901760
    %v1705 = vsub.f32 %v952, %v1704
    %v1706 = vand.u32 %v1705, 4294901760
    %v1707 = vsub.f32 %v1705, %v1706
    %v1708 = vand.u32 %v1707, 4294901760
    %1709 = vmatmul.f32.gmra.mxu0 %v1708
    %v1710 = vpop.f32.mrf.mxu0
    %v1711 = vadd.f32 %v945, %v1710
    %1712 = vdwg.mxu0
    %1713 = vmatpush.msra.mxu0 0.0
    %1714 = vmatpush.msra.mxu0 0.0
    %1715 = vmatpush.msra.mxu0 0.0
    %1716 = vmatpush.msra.mxu0 0.0
    %1717 = vmatpush.msra.mxu0 0.0
    %1718 = vmatpush.msra.mxu0 0.0
    %1719 = vmatpush.msra.mxu0 0.0
    %1720 = vmatpush.msra.mxu0 0.0
    %1721 = vmatpush.msra.mxu0 0.0
    %1722 = vmatpush.msra.mxu0 0.0
    %1723 = vmatpush.msra.mxu0 0.0
    %1724 = vmatpush.msra.mxu0 0.0
    %1725 = vmatpush.msra.mxu0 0.0
    %v1726 = vand.u32 %v965, 4294901760
    %v1727 = vsub.f32 %v965, %v1726
    %v1728 = vand.u32 %v1727, 4294901760
    %v1729 = vsub.f32 %v1727, %v1728
    %v1730 = vand.u32 %v1729, 4294901760
    %1731 = vmatpush.msra.mxu0 %v1730
    %v1732 = vand.u32 %v930, 4294901760
    %v1733 = vsub.f32 %v930, %v1732
    %v1734 = vand.u32 %v1733, 4294901760
    %v1735 = vsub.f32 %v1733, %v1734
    %v1736 = vand.u32 %v1735, 4294901760
    %1737 = vmatpush.msra.mxu0 %v1736
    %v1738 = vand.u32 %v926, 4294901760
    %v1739 = vsub.f32 %v926, %v1738
    %v1740 = vand.u32 %v1739, 4294901760
    %v1741 = vsub.f32 %v1739, %v1740
    %v1742 = vand.u32 %v1741, 4294901760
    %1743 = vmatpush.msra.mxu0 %v1742
    %v1744 = vand.u32 %v948, 4294901760
    %1745 = vmatmul.f32.gmra.mxu0 %v1744
    %v1746 = vpop.f32.mrf.mxu0
    %v1747 = vadd.f32 %v1695, %v1746
    %v1748 = vand.u32 %v950, 4294901760
    %1749 = vmatmul.f32.gmra.mxu0 %v1748
    %v1750 = vpop.f32.mrf.mxu0
    %v1751 = vadd.f32 %v1703, %v1750
    %v1752 = vand.u32 %v952, 4294901760
    %1753 = vmatmul.f32.gmra.mxu0 %v1752
    %v1754 = vpop.f32.mrf.mxu0
    %v1755 = vadd.f32 %v1711, %v1754
    %1756 = vdwg.mxu0
    %1757 = vmatpush.msra.mxu0 0.0
    %1758 = vmatpush.msra.mxu0 0.0
    %1759 = vmatpush.msra.mxu0 0.0
    %1760 = vmatpush.msra.mxu0 0.0
    %1761 = vmatpush.msra.mxu0 0.0
    %1762 = vmatpush.msra.mxu0 0.0
    %1763 = vmatpush.msra.mxu0 0.0
    %1764 = vmatpush.msra.mxu0 0.0
    %1765 = vmatpush.msra.mxu0 0.0
    %1766 = vmatpush.msra.mxu0 0.0
    %1767 = vmatpush.msra.mxu0 0.0
    %1768 = vmatpush.msra.mxu0 0.0
    %1769 = vmatpush.msra.mxu0 0.0
    %v1770 = vand.u32 %v965, 4294901760
    %v1771 = vsub.f32 %v965, %v1770
    %1772 = vmatpush.msra.mxu0 %v1771
    %v1773 = vand.u32 %v930, 4294901760
    %v1774 = vsub.f32 %v930, %v1773
    %1775 = vmatpush.msra.mxu0 %v1774
    %v1776 = vand.u32 %v926, 4294901760
    %v1777 = vsub.f32 %v926, %v1776
    %1778 = vmatpush.msra.mxu0 %v1777
    %v1779 = vand.u32 %v948, 4294901760
    %v1780 = vsub.f32 %v948, %v1779
    %1781 = vmatmul.f32.gmra.mxu0 %v1780
    %v1782 = vpop.f32.mrf.mxu0
    %v1783 = vadd.f32 %v1747, %v1782
    %v1784 = vand.u32 %v950, 4294901760
    %v1785 = vsub.f32 %v950, %v1784
    %1786 = vmatmul.f32.gmra.mxu0 %v1785
    %v1787 = vpop.f32.mrf.mxu0
    %v1788 = vadd.f32 %v1751, %v1787
    %v1789 = vand.u32 %v952, 4294901760
    %v1790 = vsub.f32 %v952, %v1789
    %1791 = vmatmul.f32.gmra.mxu0 %v1790
    %v1792 = vpop.f32.mrf.mxu0
    %v1793 = vadd.f32 %v1755, %v1792
    %1794 = vdwg.mxu0
    %1795 = vmatpush.msra.mxu0 0.0
    %1796 = vmatpush.msra.mxu0 0.0
    %1797 = vmatpush.msra.mxu0 0.0
    %1798 = vmatpush.msra.mxu0 0.0
    %1799 = vmatpush.msra.mxu0 0.0
    %1800 = vmatpush.msra.mxu0 0.0
    %1801 = vmatpush.msra.mxu0 0.0
    %1802 = vmatpush.msra.mxu0 0.0
    %1803 = vmatpush.msra.mxu0 0.0
    %1804 = vmatpush.msra.mxu0 0.0
    %1805 = vmatpush.msra.mxu0 0.0
    %1806 = vmatpush.msra.mxu0 0.0
    %1807 = vmatpush.msra.mxu0 0.0
    %v1808 = vand.u32 %v965, 4294901760
    %1809 = vmatpush.msra.mxu0 %v1808
    %v1810 = vand.u32 %v930, 4294901760
    %1811 = vmatpush.msra.mxu0 %v1810
    %v1812 = vand.u32 %v926, 4294901760
    %1813 = vmatpush.msra.mxu0 %v1812
    %v1814 = vand.u32 %v948, 4294901760
    %v1815 = vsub.f32 %v948, %v1814
    %v1816 = vand.u32 %v1815, 4294901760
    %1817 = vmatmul.f32.gmra.mxu0 %v1816
    %v1818 = vpop.f32.mrf.mxu0
    %v1819 = vadd.f32 %v1783, %v1818
    %v1820 = vand.u32 %v950, 4294901760
    %v1821 = vsub.f32 %v950, %v1820
    %v1822 = vand.u32 %v1821, 4294901760
    %1823 = vmatmul.f32.gmra.mxu0 %v1822
    %v1824 = vpop.f32.mrf.mxu0
    %v1825 = vadd.f32 %v1788, %v1824
    %v1826 = vand.u32 %v952, 4294901760
    %v1827 = vsub.f32 %v952, %v1826
    %v1828 = vand.u32 %v1827, 4294901760
    %1829 = vmatmul.f32.gmra.mxu0 %v1828
    %v1830 = vpop.f32.mrf.mxu0
    %v1831 = vadd.f32 %v1793, %v1830
    %1832 = vdwg.mxu0
    %1833 = vmatpush.msra.mxu0 0.0
    %1834 = vmatpush.msra.mxu0 0.0
    %1835 = vmatpush.msra.mxu0 0.0
    %1836 = vmatpush.msra.mxu0 0.0
    %1837 = vmatpush.msra.mxu0 0.0
    %1838 = vmatpush.msra.mxu0 0.0
    %1839 = vmatpush.msra.mxu0 0.0
    %1840 = vmatpush.msra.mxu0 0.0
    %1841 = vmatpush.msra.mxu0 0.0
    %1842 = vmatpush.msra.mxu0 0.0
    %1843 = vmatpush.msra.mxu0 0.0
    %1844 = vmatpush.msra.mxu0 0.0
    %1845 = vmatpush.msra.mxu0 0.0
    %v1846 = vand.u32 %v965, 4294901760
    %v1847 = vsub.f32 %v965, %v1846
    %v1848 = vand.u32 %v1847, 4294901760
    %1849 = vmatpush.msra.mxu0 %v1848
    %v1850 = vand.u32 %v930, 4294901760
    %v1851 = vsub.f32 %v930, %v1850
    %v1852 = vand.u32 %v1851, 4294901760
    %1853 = vmatpush.msra.mxu0 %v1852
    %v1854 = vand.u32 %v926, 4294901760
    %v1855 = vsub.f32 %v926, %v1854
    %v1856 = vand.u32 %v1855, 4294901760
    %1857 = vmatpush.msra.mxu0 %v1856
    %v1858 = vand.u32 %v948, 4294901760
    %1859 = vmatmul.f32.gmra.mxu0 %v1858
    %v1860 = vpop.f32.mrf.mxu0
    %v1861 = vadd.f32 %v1819, %v1860
    %v1862 = vand.u32 %v950, 4294901760
    %1863 = vmatmul.f32.gmra.mxu0 %v1862
    %v1864 = vpop.f32.mrf.mxu0
    %v1865 = vadd.f32 %v1825, %v1864
    %v1866 = vand.u32 %v952, 4294901760
    %1867 = vmatmul.f32.gmra.mxu0 %v1866
    %v1868 = vpop.f32.mrf.mxu0
    %v1869 = vadd.f32 %v1831, %v1868
    %1870 = vdwg.mxu0
    %1871 = vmatpush.msra.mxu0 0.0
    %1872 = vmatpush.msra.mxu0 0.0
    %1873 = vmatpush.msra.mxu0 0.0
    %1874 = vmatpush.msra.mxu0 0.0
    %1875 = vmatpush.msra.mxu0 0.0
    %1876 = vmatpush.msra.mxu0 0.0
    %1877 = vmatpush.msra.mxu0 0.0
    %1878 = vmatpush.msra.mxu0 0.0
    %1879 = vmatpush.msra.mxu0 0.0
    %1880 = vmatpush.msra.mxu0 0.0
    %1881 = vmatpush.msra.mxu0 0.0
    %1882 = vmatpush.msra.mxu0 0.0
    %1883 = vmatpush.msra.mxu0 0.0
    %v1884 = vand.u32 %v965, 4294901760
    %1885 = vmatpush.msra.mxu0 %v1884
    %v1886 = vand.u32 %v930, 4294901760
    %1887 = vmatpush.msra.mxu0 %v1886
    %v1888 = vand.u32 %v926, 4294901760
    %1889 = vmatpush.msra.mxu0 %v1888
    %v1890 = vand.u32 %v948, 4294901760
    %1891 = vmatmul.f32.gmra.mxu0 %v1890
    %v1892 = vpop.f32.mrf.mxu0
    %v1893 = vadd.f32 %v1861, %v1892
    %v1894 = vand.u32 %v950, 4294901760
    %1895 = vmatmul.f32.gmra.mxu0 %v1894
    %v1896 = vpop.f32.mrf.mxu0
    %v1897 = vadd.f32 %v1865, %v1896
    %v1898 = vand.u32 %v952, 4294901760
    %1899 = vmatmul.f32.gmra.mxu0 %v1898
    %v1900 = vpop.f32.mrf.mxu0
    %v1901 = vadd.f32 %v1869, %v1900
    %1902 = vdwg.mxu0
    %v1903 = vmul.f32 %v1191, 0.01
    %v1904 = vmul.f32 %v1425, 0.01
    %v1905 = vmul.f32 %v1659, 0.01
    %v1906 = vmul.f32 %v1893, 0.01
    %v1907 = vmul.f32 %v1195, 0.01
    %v1908 = vmul.f32 %v1429, 0.01
    %v1909 = vmul.f32 %v1663, 0.01
    %v1910 = vmul.f32 %v1897, 0.01
    %v1911 = vmul.f32 %v1199, 0.01
    %v1912 = vmul.f32 %v1433, 0.01
    %v1913 = vmul.f32 %v1667, 0.01
    %v1914 = vmul.f32 %v1901, 0.01
    %v1915 = vmax.f32 %v1191, %v1903
    %v1916 = vmax.f32 %v1425, %v1904
    %v1917 = vmax.f32 %v1659, %v1905
    %v1918 = vmax.f32 %v1893, %v1906
    %v1919 = vmax.f32 %v1195, %v1907
    %v1920 = vmax.f32 %v1429, %v1908
    %v1921 = vmax.f32 %v1663, %v1909
    %v1922 = vmax.f32 %v1897, %v1910
    %v1923 = vmax.f32 %v1199, %v1911
    %v1924 = vmax.f32 %v1433, %v1912
    %v1925 = vmax.f32 %v1667, %v1913
    %v1926 = vmax.f32 %v1901, %v1914
    %1927 = vset.pattern.permute.xlu0 24
    %1928 = vperm.xlu0 %1927, %v43
    %v1929 = vpop.permute.xlu0 %1928
    %1931 = vset.pattern.permute.xlu0 24
    %1932 = vperm.xlu0 %1931, %v44
    %v1933 = vpop.permute.xlu0 %1932
    %1935 = vset.pattern.permute.xlu0 24
    %1936 = vperm.xlu0 %1935, %v45
    %v1937 = vpop.permute.xlu0 %1936
    %v1939 = vmul.f32 %v1929, %v1915
    %v1940 = vmul.f32 %v1929, %v1916
    %v1941 = vmul.f32 %v1929, %v1917
    %v1942 = vmul.f32 %v1929, %v1918
    %v1943 = vmul.f32 %v1933, %v1919
    %v1944 = vmul.f32 %v1933, %v1920
    %v1945 = vmul.f32 %v1933, %v1921
    %v1946 = vmul.f32 %v1933, %v1922
    %v1947 = vmul.f32 %v1937, %v1923
    %v1948 = vmul.f32 %v1937, %v1924
    %v1949 = vmul.f32 %v1937, %v1925
    %v1950 = vmul.f32 %v1937, %v1926
    %v1951 = vadd.f32 %v1939, %v1943
    %v1952 = vsel %vm954, %v1947, 0.0
    %v1953 = vadd.f32 %v1951, %v1952
    %v1954 = vrot.slane %v1953, 4
    %v1955 = vadd.f32 %v1953, %v1954
    %v1956 = vrot.slane %v1955, 2
    %v1957 = vadd.f32 %v1955, %v1956
    %v1958 = vrot.slane %v1957, 1
    %v1959 = vadd.f32 %v1957, %v1958
    %v1960 = vadd.f32 %v1940, %v1944
    %v1961 = vsel %vm954, %v1948, 0.0
    %v1962 = vadd.f32 %v1960, %v1961
    %v1963 = vrot.slane %v1962, 4
    %v1964 = vadd.f32 %v1962, %v1963
    %v1965 = vrot.slane %v1964, 2
    %v1966 = vadd.f32 %v1964, %v1965
    %v1967 = vrot.slane %v1966, 1
    %v1968 = vadd.f32 %v1966, %v1967
    %v1969 = vadd.f32 %v1941, %v1945
    %v1970 = vsel %vm954, %v1949, 0.0
    %v1971 = vadd.f32 %v1969, %v1970
    %v1972 = vrot.slane %v1971, 4
    %v1973 = vadd.f32 %v1971, %v1972
    %v1974 = vrot.slane %v1973, 2
    %v1975 = vadd.f32 %v1973, %v1974
    %v1976 = vrot.slane %v1975, 1
    %v1977 = vadd.f32 %v1975, %v1976
    %v1978 = vadd.f32 %v1942, %v1946
    %v1979 = vsel %vm954, %v1950, 0.0
    %v1980 = vadd.f32 %v1978, %v1979
    %v1981 = vrot.slane %v1980, 4
    %v1982 = vadd.f32 %v1980, %v1981
    %v1983 = vrot.slane %v1982, 2
    %v1984 = vadd.f32 %v1982, %v1983
    %v1985 = vrot.slane %v1984, 1
    %v1986 = vadd.f32 %v1984, %v1985
    %1988 = vset.pattern.permute.xlu0 24
    %1989 = vperm.xlu0 %1988, %v46
    %v1990 = vpop.permute.xlu0 %1989
    %v1992 = vperm.slane %v42, 0
    %v1993 = vperm.slane %v42, 2
    %v1994 = vperm.slane %v42, 4
    %v1995 = vperm.slane %v42, 6
    %v2000 = vmul.f32 %v1990, %v1992
    %v2001 = vmul.f32 %v1990, %v1993
    %v2002 = vmul.f32 %v1990, %v1994
    %v2003 = vmul.f32 %v1990, %v1995
    %v2004 = vadd.f32 %v1959, %v2000
    %v2005 = vadd.f32 %v1968, %v2001
    %v2006 = vadd.f32 %v1977, %v2002
    %v2007 = vadd.f32 %v1986, %v2003
    %2009 = vset.pattern.permute.xlu0 24
    %2010 = vperm.xlu0 %2009, %v47
    %v2011 = vpop.permute.xlu0 %2010
    %v2013 = vperm.slane %v42, 1
    %v2014 = vperm.slane %v42, 3
    %v2015 = vperm.slane %v42, 5
    %v2016 = vperm.slane %v42, 7
    %v2021 = vmul.f32 %v2011, %v2013
    %v2022 = vmul.f32 %v2011, %v2014
    %v2023 = vmul.f32 %v2011, %v2015
    %v2024 = vmul.f32 %v2011, %v2016
    %v2025 = vadd.f32 %v2004, %v2021
    %v2026 = vadd.f32 %v2005, %v2022
    %v2027 = vadd.f32 %v2006, %v2023
    %v2028 = vadd.f32 %v2007, %v2024
    %2029 = vset.pattern.permute.xlu0 25
    %2030 = vperm.xlu0 %2029, %v46
    %v2031 = vpop.permute.xlu0 %2030
    %v2033 = vadd.f32 %v2025, %v2031
    %v2034 = vadd.f32 %v2026, %v2031
    %v2035 = vadd.f32 %v2027, %v2031
    %v2036 = vadd.f32 %v2028, %v2031
    %v2037 = vtanh.pop %v2033
    %v2038 = vtanh.pop %v2034
    %v2039 = vtanh.pop %v2035
    %v2040 = vtanh.pop %v2036
    %2041 = vset.pattern.permute.xlu0 26
    %2042 = vperm.xlu0 %2041, %v46
    %v2043 = vpop.permute.xlu0 %2042
    %v2045 = vmul.f32 %v2043, %v2037
    %v2046 = vmul.f32 %v2043, %v2038
    %v2047 = vmul.f32 %v2043, %v2039
    %v2048 = vmul.f32 %v2043, %v2040
    %2049 = vset.pattern.permute.xlu0 27
    %2050 = vperm.xlu0 %2049, %v46
    %v2051 = vpop.permute.xlu0 %2050
    %v2053 = vadd.f32 %v2045, %v2051
    %v2054 = vadd.f32 %v2046, %v2051
    %v2055 = vadd.f32 %v2047, %v2051
    %v2056 = vadd.f32 %v2048, %v2051
    %v2057 = vmul.f32 %v2053, 0.01
    %v2058 = vmul.f32 %v2054, 0.01
    %v2059 = vmul.f32 %v2055, 0.01
    %v2060 = vmul.f32 %v2056, 0.01
    %v2061 = vmax.f32 %v2053, %v2057
    %v2062 = vmax.f32 %v2054, %v2058
    %v2063 = vmax.f32 %v2055, %v2059
    %v2064 = vmax.f32 %v2056, %v2060
    %v2065 = vadd.f32 %v2061, %v1915
    %v2066 = vadd.f32 %v2062, %v1916
    %v2067 = vadd.f32 %v2063, %v1917
    %v2068 = vadd.f32 %v2064, %v1918
    %v2069 = vadd.f32 %v2065, %v1992
    %v2070 = vadd.f32 %v2066, %v1993
    %v2071 = vadd.f32 %v2067, %v1994
    %v2072 = vadd.f32 %v2068, %v1995
    %v2077 = vrot.slane %v2070, 7
    %v2078 = vrot.slane %v2071, 6
    %v2079 = vrot.slane %v2072, 5
    %vm2080 = vcmask 1040384
    %v2081 = vsel %vm2080, %v2069, %v2077
    %vm2082 = vcmask 1042434
    %v2083 = vsel %vm2082, %v2078, %v2079
    %v2084 = vsel %vm82, %v2081, %v2083
    %v2086 = vlaneseq
    %vm2087 = vcmp.ge.s32.totalorder %v2086, 0
    %vm2088 = vcmp.lt.s32.totalorder %v2086, 512
    %vm2089 = vmand %vm2087, %vm2088
    %2090 = vst.msk [vmem:[#allocation7] sm:$0xf] %vm2089, %v2084
    // Predicated region
    $region18: #{_net_forward_jit.1} parent=1 // pred_check
      _
    $region19: #{_net_forward_jit.1} parent=1 // pred_check_branch
      %2092 = sbr.rel (0) target = $region21
    $region20: #{_net_forward_jit.1} parent=1 // pred_region
      %2094 = vsyncadd [#allocation4], 48
      %s2096 = sshll.u32 [#allocation7], 4
      %s2097 = int_to_ptr.vmem [resolvable:$true] %s2096
      %s2098 = sshll.u32 %s2, 4
      %s2099 = int_to_ptr.hbm [resolvable:$true] %s2098
      %2101 = dma.vmem_to_hbm [thread:$0]  %s2097, 16, %s2099, [#allocation4]
    $region21: #{_net_forward_jit.1} parent=1 // pred_fallthru
      _
    // Predicated region
    $region22: #{_net_forward_jit.1} parent=1 // pred_check
      _
    $region23: #{_net_forward_jit.1} parent=1 // pred_check_branch
      %2103 = sbr.rel (0) target = $region25
    $region24: #{_net_forward_jit.1} parent=1 // pred_region
      %2105 = dma.done [#allocation4], 64
    $region25: #{_net_forward_jit.1} parent=1 // pred_fallthru
      _
    %2106 = vsyncpa [#allocation3], 1
    %2107 = vsyncpa [#allocation6], 1
    %2108 = vsyncpa [#allocation4], 1

</llo_original>
